<compile_context>
chip_gen: v7x
topology: tpu7x:2x2x1
jax: 0.10.0
libtpu: 0.0.40
codegen_flags: <defaults>
</compile_context>

<pallas_src>
import functools

import jax
import jax.numpy as jnp
from jax import lax
from jax.experimental import pallas as pl
from jax.experimental.pallas import tpu as pltpu

SIGMA = 32.0        # module default
ADJ_RATIO = 0.2     # module default
SELF_LOOP = True    # module default
NEG_SLOPE = 0.01    # nn.LeakyReLU default
LAYER_NUMS = 2      # module default


# ---------------------------------------------------------------------------
# Fused kernel: one grid step == one I2GC layer (+ residual on the last step)
# ---------------------------------------------------------------------------
def _fused_i2gcn_kernel(imp_col_ref, imp_row_ref, x0_ref, w12_ref, wb_ref,
                        bb_ref, out_ref, x_vmem, ap_vmem, *, n, dout, k):
    layer = pl.program_id(0)
    last = pl.num_programs(0) - 1

    row = lax.broadcasted_iota(jnp.int32, (n, n), 0)
    col = lax.broadcasted_iota(jnp.int32, (n, n), 1)
    eye = jnp.where(row == col, 1.0, 0.0).astype(jnp.float32)

    # ---- one-time init: stage x into the VMEM carry and build the prior
    #      adjacency once (it depends only on `importances_batch`). -----------
    @pl.when(layer == 0)
    def _init():
        x_vmem[...] = x0_ref[...]
        d = imp_col_ref[...] - imp_row_ref[...]             # (n,1)-(1,n)->(n,n)
        a = jnp.exp(-(d * d) / SIGMA)
        if SELF_LOOP:
            a = a + eye
        ap_vmem[...] = a / jnp.sum(a, axis=-1, keepdims=True)

    x = x_vmem[...]                                         # layer input (n, D)

    # ---- feature adjacency: cosine similarity + in-kernel top-k ------------
    xn = x * lax.rsqrt(jnp.sum(x * x, axis=-1, keepdims=True) + 1e-12)
    sim = lax.dot_general(xn, xn, (((1,), (1,)), ((), ())),  # xn @ xn.T, (n,n)
                          preferred_element_type=jnp.float32)
    # keep sim[i, j] iff it is >= the k-th largest of row i, i.e. iff fewer
    # than k entries of row i are STRICTLY greater than it (same tie behaviour
    # as `sim >= kth_largest`).  Rank counting = VPU compare/reduce, no sort.
    gt = (sim[:, None, :] > sim[:, :, None]).astype(jnp.float32)   # (n, n, n)
    n_greater = jnp.sum(gt, axis=-1)                                # (n, n)
    af = jnp.where(n_greater < float(k), 1.0, 0.0)
    if SELF_LOOP:
        af = af + eye
    af = af / jnp.sum(af, axis=-1, keepdims=True)

    ap = ap_vmem[...]

    # ---- dual-branch GCN with lane-dense (128-wide) matmuls ----------------
    # x @ [w1 | w2] -> [x@w1 | x@w2]                         (n, 2*dout)
    xw = jnp.dot(x, w12_ref[0], preferred_element_type=jnp.float32)
    lane = lax.broadcasted_iota(jnp.int32, xw.shape, 1)
    xw_l = jnp.where(lane < dout, xw, 0.0)                  # [x@w1 |   0 ]
    xw_r = jnp.where(lane >= dout, xw, 0.0)                 # [  0  | x@w2]
    # [A1@(x@w1) | A2@(x@w2)] as two lane-dense matmuls; the complementary
    # halves of each product are exactly zero, so the sum is exact.
    mid = (jnp.dot(ap, xw_l, preferred_element_type=jnp.float32)
           + jnp.dot(af, xw_r, preferred_element_type=jnp.float32))
    h_cat = jnp.maximum(mid, 0.0)                           # relu, (n, 2*dout)
    # [h1 | h2] @ [[wb1], [wb2]] = h1@wb1 + h2@wb2           (n, D)
    z = jnp.dot(h_cat, wb_ref[0], preferred_element_type=jnp.float32) + bb_ref[0]
    x_new = jnp.where(z > 0, z, NEG_SLOPE * z)              # LeakyReLU

    x_vmem[...] = x_new                                     # carry to next layer

    # ---- residual fused into the last step: out = x_L + x_{L-1} * imp ------
    @pl.when(layer == last)
    def _finalize():
        out_ref[...] = x_new + x * imp_col_ref[...]


def pack_params(params):
    """Stack per-layer weights so the whole forward is ONE pallas_call."""
    w12 = jnp.stack([jnp.concatenate([w1, w2], axis=1)
                     for (w1, w2, _, _, _) in params])          # (L, D, 2*Dout)
    wb = jnp.stack([jnp.concatenate([wb1, wb2], axis=0)
                    for (_, _, wb1, wb2, _) in params])         # (L, 2*Dout, D)
    bb = jnp.stack([b for (_, _, _, _, b) in params])           # (L, 1, D)
    return w12, wb, bb


@jax.jit
def i2gcn_forward(x, importances_batch, w12, wb, bb):
    n, d = x.shape
    num_layers, _, two_dout = w12.shape
    dout = two_dout // 2
    k = max(1, int(ADJ_RATIO * n))

    kernel = functools.partial(_fused_i2gcn_kernel, n=n, dout=dout, k=k)
    return pl.pallas_call(
        kernel,
        out_shape=jax.ShapeDtypeStruct((n, d), jnp.float32),
        grid_spec=pltpu.PrefetchScalarGridSpec(
            num_scalar_prefetch=0,
            grid=(num_layers,),
            in_specs=[
                pl.BlockSpec((n, 1), lambda l: (0, 0)),              # imp (col)
                pl.BlockSpec((1, n), lambda l: (0, 0)),              # imp (row)
                pl.BlockSpec((n, d), lambda l: (0, 0)),              # x0
                pl.BlockSpec((1, d, two_dout), lambda l: (l, 0, 0)),  # [w1|w2]
                pl.BlockSpec((1, two_dout, d), lambda l: (l, 0, 0)),  # [wb1;wb2]
                pl.BlockSpec((1, 1, d), lambda l: (l, 0, 0)),         # bias
            ],
            out_specs=pl.BlockSpec((n, d), lambda l: (0, 0)),
            scratch_shapes=[pltpu.VMEM((n, d), jnp.float32),   # x carried across layers
                            pltpu.VMEM((n, n), jnp.float32)],  # prior adjacency (built once)
        ),
        compiler_params=pltpu.CompilerParams(
            dimension_semantics=("arbitrary",)),   # layers are sequentially dependent
    )(importances_batch, importances_batch.reshape(1, n), x, w12, wb, bb)


# ---------------------------------------------------------------------------
# Pure-JAX reference (defines the semantics the kernel must match)
# ---------------------------------------------------------------------------
def i2gcn_reference(x, imp, params):
    n = x.shape[0]
    h = x
    for (w1, w2, wb1, wb2, bb) in params:
        h = x
        d = imp - imp.reshape(1, n)
        a = jnp.exp(-(d * d) / SIGMA)
        if SELF_LOOP:
            a = a + jnp.eye(n, dtype=jnp.float32)
        adj_prior = a / a.sum(-1, keepdims=True)

        xn = x * lax.rsqrt((x * x).sum(-1, keepdims=True) + 1e-12)
        sim = xn @ xn.T
        k = max(1, int(ADJ_RATIO * n))
        thresh = lax.top_k(sim, k)[0][:, k - 1:k]
        af = jnp.where(sim >= thresh, 1.0, 0.0)
        if SELF_LOOP:
            af = af + jnp.eye(n, dtype=jnp.float32)
        adj_feat = af / af.sum(-1, keepdims=True)

        h1 = jnp.maximum(adj_prior @ (x @ w1), 0.0)
        h2 = jnp.maximum(adj_feat @ (x @ w2), 0.0)
        z = h1 @ wb1 + h2 @ wb2 + bb
        x = jnp.where(z > 0, z, NEG_SLOPE * z)
    return x + h * imp


def init_params(key, layer_nums, d_in, d_out):
    params = []
    for i in range(layer_nums):
        k1, k2, k3, k4, k5 = jax.random.split(jax.random.fold_in(key, i), 5)
        scale_in = 1.0 / jnp.sqrt(jnp.float32(d_in))
        scale_out = 1.0 / jnp.sqrt(jnp.float32(d_out))
        w1 = jax.random.normal(k1, (d_in, d_out), jnp.float32) * scale_in
        w2 = jax.random.normal(k2, (d_in, d_out), jnp.float32) * scale_in
        wb1 = jax.random.normal(k3, (d_out, d_in), jnp.float32) * scale_out
        wb2 = jax.random.normal(k4, (d_out, d_in), jnp.float32) * scale_out
        bb = jax.random.uniform(k5, (1, d_in), jnp.float32, -0.01, 0.01)
        params.append((w1, w2, wb1, wb2, bb))
    return params


if __name__ == "__main__":
    BATCH = 16        # number of graph nodes (== batch_size in the torch code)
    INTER_DIM = 128   # I2GCLayer in_channel
    OUT_DIM = 64      # I2GCLayer out_channel (internal branch width)

    key = jax.random.PRNGKey(0)
    kx, ki, kp = jax.random.split(key, 3)
    x = jax.random.normal(kx, (BATCH, INTER_DIM), jnp.float32)
    importances_batch = jax.random.uniform(ki, (BATCH, 1), jnp.float32)
    params = init_params(kp, LAYER_NUMS, INTER_DIM, OUT_DIM)
    w12, wb, bb = pack_params(params)   # one-time packing, outside the hot path

    out = i2gcn_forward(x, importances_batch, w12, wb, bb)
    out = jax.block_until_ready(out)

    ref = jax.block_until_ready(i2gcn_reference(x, importances_batch, params))
    assert out.shape == (BATCH, INTER_DIM) and out.dtype == jnp.float32
    assert jnp.allclose(out, ref, rtol=2e-3, atol=2e-3), (
        float(jnp.max(jnp.abs(out - ref))))

    print("KERNEL_OK")
</pallas_src>

<mosaic_0001>
module attributes {stable_mosaic.version = 11 : i64} {
  func.func @_fused_i2gcn_kernel(%arg0: i32, %arg1: memref<16x1xf32, #tpu.memory_space<vmem>>, %arg2: memref<1x16xf32, #tpu.memory_space<vmem>>, %arg3: memref<16x128xf32, #tpu.memory_space<vmem>>, %arg4: memref<1x128x128xf32, #tpu.memory_space<vmem>>, %arg5: memref<1x128x128xf32, #tpu.memory_space<vmem>>, %arg6: memref<1x1x128xf32, #tpu.memory_space<vmem>>, %arg7: memref<16x128xf32, #tpu.memory_space<vmem>>, %arg8: memref<16x128xf32, #tpu.memory_space<vmem>>, %arg9: memref<16x16xf32, #tpu.memory_space<vmem>>) attributes {dimension_semantics = [#tpu.dimension_semantics<arbitrary>], iteration_bounds = array<i64: 2>, scalar_prefetch = 0 : i64, scratch_operands = 2 : i64, tpu.core_type = #tpu.core_type<tc>, window_params = [{pipeline_mode = #tpu.pipeline_mode<synchronous>, transform_indices = @transform_0, window_bounds = array<i64: 16, 1>}, {pipeline_mode = #tpu.pipeline_mode<synchronous>, transform_indices = @transform_1, window_bounds = array<i64: 1, 16>}, {pipeline_mode = #tpu.pipeline_mode<synchronous>, transform_indices = @transform_2, window_bounds = array<i64: 16, 128>}, {transform_indices = @transform_3, window_bounds = array<i64: 1, 128, 128>}, {transform_indices = @transform_4, window_bounds = array<i64: 1, 128, 128>}, {transform_indices = @transform_5, window_bounds = array<i64: 1, 1, 128>}, {pipeline_mode = #tpu.pipeline_mode<synchronous>, transform_indices = @transform_6, window_bounds = array<i64: 16, 128>}]} {
    %0 = tpu.iota {dimensions = array<i32: 0>} : vector<16x16xi32>
    %1 = tpu.iota {dimensions = array<i32: 1>} : vector<16x16xi32>
    %2 = arith.cmpi eq, %0, %1 : vector<16x16xi32>
    %cst = arith.constant 1.000000e+00 : f32
    %cst_0 = arith.constant 0.000000e+00 : f32
    %3 = vector.broadcast %cst : f32 to vector<16x16xf32>
    %4 = vector.broadcast %cst_0 : f32 to vector<16x16xf32>
    %5 = arith.select %2, %3, %4 : vector<16x16xi1>, vector<16x16xf32>
    %c0_i32 = arith.constant 0 : i32
    %6 = arith.cmpi eq, %arg0, %c0_i32 : i32
    %7 = arith.extui %6 : i1 to i32
    %c0_i32_1 = arith.constant 0 : i32
    %8 = arith.cmpi ne, %7, %c0_i32_1 : i32
    scf.if %8 {
      %c0_35 = arith.constant 0 : index
      %c0_36 = arith.constant 0 : index
      %71 = vector.load %arg3[%c0_35, %c0_36] : memref<16x128xf32, #tpu.memory_space<vmem>>, vector<16x128xf32>
      %c0_37 = arith.constant 0 : index
      %c0_38 = arith.constant 0 : index
      %72 = vector.load %arg8[%c0_37, %c0_38] : memref<16x128xf32, #tpu.memory_space<vmem>>, vector<16x128xf32>
      tpu.vector_store %arg8[%c0_37, %c0_38], %71 {strides = array<i32>} : memref<16x128xf32, #tpu.memory_space<vmem>>, vector<16x128xf32>,
      %c0_39 = arith.constant 0 : index
      %c0_40 = arith.constant 0 : index
      %73 = vector.load %arg1[%c0_39, %c0_40] : memref<16x1xf32, #tpu.memory_space<vmem>>, vector<16x1xf32>
      %c0_41 = arith.constant 0 : index
      %c0_42 = arith.constant 0 : index
      %74 = vector.load %arg2[%c0_41, %c0_42] : memref<1x16xf32, #tpu.memory_space<vmem>>, vector<1x16xf32>
      %75 = vector.broadcast %73 : vector<16x1xf32> to vector<16x16xf32>
      %76 = vector.broadcast %74 : vector<1x16xf32> to vector<16x16xf32>
      %77 = arith.subf %75, %76 : vector<16x16xf32>
      %78 = arith.mulf %77, %77 : vector<16x16xf32>
      %cst_43 = arith.constant 0.000000e+00 : f32
      %79 = vector.broadcast %cst_43 : f32 to vector<16x16xf32>
      %80 = arith.subf %79, %78 : vector<16x16xf32>
      %cst_44 = arith.constant 3.200000e+01 : f32
      %81 = vector.broadcast %cst_44 : f32 to vector<16x16xf32>
      %82 = arith.divf %80, %81 : vector<16x16xf32>
      %83 = math.exp %82 : vector<16x16xf32>
      %84 = arith.addf %83, %5 : vector<16x16xf32>
      %cst_45 = arith.constant dense<0.000000e+00> : vector<16xf32>
      %85 = vector.multi_reduction <add>, %84, %cst_45 [1] : vector<16x16xf32> to vector<16xf32>
      %86 = vector.shape_cast %85 : vector<16xf32> to vector<16x1xf32>
      %87 = vector.broadcast %86 : vector<16x1xf32> to vector<16x16xf32>
      %88 = arith.divf %84, %87 : vector<16x16xf32>
      %c0_46 = arith.constant 0 : index
      %c0_47 = arith.constant 0 : index
      %89 = vector.load %arg9[%c0_46, %c0_47] : memref<16x16xf32, #tpu.memory_space<vmem>>, vector<16x16xf32>
      tpu.vector_store %arg9[%c0_46, %c0_47], %88 {strides = array<i32>} : memref<16x16xf32, #tpu.memory_space<vmem>>, vector<16x16xf32>,
    } else {
    }
    %c0 = arith.constant 0 : index
    %c0_2 = arith.constant 0 : index
    %9 = vector.load %arg8[%c0, %c0_2] : memref<16x128xf32, #tpu.memory_space<vmem>>, vector<16x128xf32>
    %10 = arith.mulf %9, %9 : vector<16x128xf32>
    %cst_3 = arith.constant dense<0.000000e+00> : vector<16xf32>
    %11 = vector.multi_reduction <add>, %10, %cst_3 [1] : vector<16x128xf32> to vector<16xf32>
    %12 = vector.shape_cast %11 : vector<16xf32> to vector<16x1xf32>
    %cst_4 = arith.constant 9.99999996E-13 : f32
    %13 = vector.broadcast %cst_4 : f32 to vector<16x1xf32>
    %14 = arith.addf %12, %13 : vector<16x1xf32>
    %15 = math.rsqrt %14 : vector<16x1xf32>
    %16 = vector.broadcast %15 : vector<16x1xf32> to vector<16x128xf32>
    %17 = arith.mulf %9, %16 : vector<16x128xf32>
    %cst_5 = arith.constant dense<0.000000e+00> : vector<16x16xf32>
    %18 = tpu.matmul %17, %17, %cst_5 {dimension_numbers = #tpu.dot_dimension_numbers<[1], [1], [0], [0], [0, 0, 1, 0], [], []>} : vector<16x128xf32>, vector<16x128xf32>, vector<16x16xf32> -> vector<16x16xf32>
    %19 = vector.shape_cast %18 : vector<16x16xf32> to vector<16x1x16xf32>
    %20 = vector.shape_cast %18 : vector<16x16xf32> to vector<16x16x1xf32>
    %21 = vector.broadcast %19 : vector<16x1x16xf32> to vector<16x16x16xf32>
    %22 = vector.broadcast %20 : vector<16x16x1xf32> to vector<16x16x16xf32>
    %23 = arith.cmpf ogt, %21, %22 : vector<16x16x16xf32>
    %24 = arith.extui %23 : vector<16x16x16xi1> to vector<16x16x16xi32>
    %25 = arith.sitofp %24 : vector<16x16x16xi32> to vector<16x16x16xf32>
    %cst_6 = arith.constant dense<0.000000e+00> : vector<16x16xf32>
    %26 = vector.multi_reduction <add>, %25, %cst_6 [2] : vector<16x16x16xf32> to vector<16x16xf32>
    %cst_7 = arith.constant 3.000000e+00 : f32
    %27 = vector.broadcast %cst_7 : f32 to vector<16x16xf32>
    %28 = arith.cmpf olt, %26, %27 : vector<16x16xf32>
    %cst_8 = arith.constant 1.000000e+00 : f32
    %cst_9 = arith.constant 0.000000e+00 : f32
    %29 = vector.broadcast %cst_8 : f32 to vector<16x16xf32>
    %30 = vector.broadcast %cst_9 : f32 to vector<16x16xf32>
    %31 = arith.select %28, %29, %30 : vector<16x16xi1>, vector<16x16xf32>
    %32 = arith.addf %31, %5 : vector<16x16xf32>
    %cst_10 = arith.constant dense<0.000000e+00> : vector<16xf32>
    %33 = vector.multi_reduction <add>, %32, %cst_10 [1] : vector<16x16xf32> to vector<16xf32>
    %34 = vector.shape_cast %33 : vector<16xf32> to vector<16x1xf32>
    %35 = vector.broadcast %34 : vector<16x1xf32> to vector<16x16xf32>
    %36 = arith.divf %32, %35 : vector<16x16xf32>
    %c0_11 = arith.constant 0 : index
    %c0_12 = arith.constant 0 : index
    %37 = vector.load %arg9[%c0_11, %c0_12] : memref<16x16xf32, #tpu.memory_space<vmem>>, vector<16x16xf32>
    %c0_13 = arith.constant 0 : index
    %c0_14 = arith.constant 0 : index
    %c0_15 = arith.constant 0 : index
    %38 = vector.load %arg4[%c0_13, %c0_14, %c0_15] : memref<1x128x128xf32, #tpu.memory_space<vmem>>, vector<1x128x128xf32>
    %39 = vector.shape_cast %38 : vector<1x128x128xf32> to vector<128x128xf32>
    %cst_16 = arith.constant dense<0.000000e+00> : vector<16x128xf32>
    %40 = tpu.matmul %9, %39, %cst_16 {dimension_numbers = #tpu.dot_dimension_numbers<[1], [0], [0], [1], [0, 0, 1, 1], [], []>} : vector<16x128xf32>, vector<128x128xf32>, vector<16x128xf32> -> vector<16x128xf32>
    %41 = tpu.iota {dimensions = array<i32: 1>} : vector<16x128xi32>
    %c64_i32 = arith.constant 64 : i32
    %42 = vector.broadcast %c64_i32 : i32 to vector<16x128xi32>
    %43 = arith.cmpi slt, %41, %42 : vector<16x128xi32>
    %cst_17 = arith.constant 0.000000e+00 : f32
    %44 = vector.broadcast %cst_17 : f32 to vector<16x128xf32>
    %45 = arith.select %43, %40, %44 : vector<16x128xi1>, vector<16x128xf32>
    %c64_i32_18 = arith.constant 64 : i32
    %46 = vector.broadcast %c64_i32_18 : i32 to vector<16x128xi32>
    %47 = arith.cmpi sge, %41, %46 : vector<16x128xi32>
    %cst_19 = arith.constant 0.000000e+00 : f32
    %48 = vector.broadcast %cst_19 : f32 to vector<16x128xf32>
    %49 = arith.select %47, %40, %48 : vector<16x128xi1>, vector<16x128xf32>
    %cst_20 = arith.constant dense<0.000000e+00> : vector<16x128xf32>
    %50 = tpu.matmul %37, %45, %cst_20 {dimension_numbers = #tpu.dot_dimension_numbers<[1], [0], [0], [1], [0, 0, 1, 1], [], []>} : vector<16x16xf32>, vector<16x128xf32>, vector<16x128xf32> -> vector<16x128xf32>
    %cst_21 = arith.constant dense<0.000000e+00> : vector<16x128xf32>
    %51 = tpu.matmul %36, %49, %cst_21 {dimension_numbers = #tpu.dot_dimension_numbers<[1], [0], [0], [1], [0, 0, 1, 1], [], []>} : vector<16x16xf32>, vector<16x128xf32>, vector<16x128xf32> -> vector<16x128xf32>
    %52 = arith.addf %50, %51 : vector<16x128xf32>
    %cst_22 = arith.constant 0.000000e+00 : f32
    %53 = vector.broadcast %cst_22 : f32 to vector<16x128xf32>
    %54 = arith.maximumf %52, %53 : vector<16x128xf32>
    %c0_23 = arith.constant 0 : index
    %c0_24 = arith.constant 0 : index
    %c0_25 = arith.constant 0 : index
    %55 = vector.load %arg5[%c0_23, %c0_24, %c0_25] : memref<1x128x128xf32, #tpu.memory_space<vmem>>, vector<1x128x128xf32>
    %56 = vector.shape_cast %55 : vector<1x128x128xf32> to vector<128x128xf32>
    %cst_26 = arith.constant dense<0.000000e+00> : vector<16x128xf32>
    %57 = tpu.matmul %54, %56, %cst_26 {dimension_numbers = #tpu.dot_dimension_numbers<[1], [0], [0], [1], [0, 0, 1, 1], [], []>} : vector<16x128xf32>, vector<128x128xf32>, vector<16x128xf32> -> vector<16x128xf32>
    %c0_27 = arith.constant 0 : index
    %c0_28 = arith.constant 0 : index
    %c0_29 = arith.constant 0 : index
    %58 = vector.load %arg6[%c0_27, %c0_28, %c0_29] : memref<1x1x128xf32, #tpu.memory_space<vmem>>, vector<1x1x128xf32>
    %59 = vector.shape_cast %58 : vector<1x1x128xf32> to vector<1x128xf32>
    %60 = vector.broadcast %59 : vector<1x128xf32> to vector<16x128xf32>
    %61 = arith.addf %57, %60 : vector<16x128xf32>
    %cst_30 = arith.constant 0.000000e+00 : f32
    %62 = vector.broadcast %cst_30 : f32 to vector<16x128xf32>
    %63 = arith.cmpf ogt, %61, %62 : vector<16x128xf32>
    %cst_31 = arith.constant 0.00999999977 : f32
    %64 = vector.broadcast %cst_31 : f32 to vector<16x128xf32>
    %65 = arith.mulf %64, %61 : vector<16x128xf32>
    %66 = arith.select %63, %61, %65 : vector<16x128xi1>, vector<16x128xf32>
    %c0_32 = arith.constant 0 : index
    %c0_33 = arith.constant 0 : index
    %67 = vector.load %arg8[%c0_32, %c0_33] : memref<16x128xf32, #tpu.memory_space<vmem>>, vector<16x128xf32>
    tpu.vector_store %arg8[%c0_32, %c0_33], %66 {strides = array<i32>} : memref<16x128xf32, #tpu.memory_space<vmem>>, vector<16x128xf32>,
    %c1_i32 = arith.constant 1 : i32
    %68 = arith.cmpi eq, %arg0, %c1_i32 : i32
    %69 = arith.extui %68 : i1 to i32
    %c0_i32_34 = arith.constant 0 : i32
    %70 = arith.cmpi ne, %69, %c0_i32_34 : i32
    scf.if %70 {
      %c0_35 = arith.constant 0 : index
      %c0_36 = arith.constant 0 : index
      %71 = vector.load %arg1[%c0_35, %c0_36] : memref<16x1xf32, #tpu.memory_space<vmem>>, vector<16x1xf32>
      %72 = vector.broadcast %71 : vector<16x1xf32> to vector<16x128xf32>
      %73 = arith.mulf %9, %72 : vector<16x128xf32>
      %74 = arith.addf %66, %73 : vector<16x128xf32>
      %c0_37 = arith.constant 0 : index
      %c0_38 = arith.constant 0 : index
      %75 = vector.load %arg7[%c0_37, %c0_38] : memref<16x128xf32, #tpu.memory_space<vmem>>, vector<16x128xf32>
      tpu.vector_store %arg7[%c0_37, %c0_38], %74 {strides = array<i32>} : memref<16x128xf32, #tpu.memory_space<vmem>>, vector<16x128xf32>,
    } else {
    }
    return
  }
  func.func @transform_0(%arg0: i32) -> (i32, i32) {
    %c0_i32 = arith.constant 0 : i32
    %c0_i32_0 = arith.constant 0 : i32
    %c0_i32_1 = arith.constant 0 : i32
    return %c0_i32, %c0_i32_0 : i32, i32
  }
  func.func @transform_1(%arg0: i32) -> (i32, i32) {
    %c0_i32 = arith.constant 0 : i32
    %c0_i32_0 = arith.constant 0 : i32
    %c0_i32_1 = arith.constant 0 : i32
    return %c0_i32, %c0_i32_0 : i32, i32
  }
  func.func @transform_2(%arg0: i32) -> (i32, i32) {
    %c0_i32 = arith.constant 0 : i32
    %c0_i32_0 = arith.constant 0 : i32
    %c0_i32_1 = arith.constant 0 : i32
    return %c0_i32, %c0_i32_0 : i32, i32
  }
  func.func @transform_3(%arg0: i32) -> (i32, i32, i32) {
    %c0_i32 = arith.constant 0 : i32
    %c0_i32_0 = arith.constant 0 : i32
    %c0_i32_1 = arith.constant 0 : i32
    return %arg0, %c0_i32, %c0_i32_0 : i32, i32, i32
  }
  func.func @transform_4(%arg0: i32) -> (i32, i32, i32) {
    %c0_i32 = arith.constant 0 : i32
    %c0_i32_0 = arith.constant 0 : i32
    %c0_i32_1 = arith.constant 0 : i32
    return %arg0, %c0_i32, %c0_i32_0 : i32, i32, i32
  }
  func.func @transform_5(%arg0: i32) -> (i32, i32, i32) {
    %c0_i32 = arith.constant 0 : i32
    %c0_i32_0 = arith.constant 0 : i32
    %c0_i32_1 = arith.constant 0 : i32
    return %arg0, %c0_i32, %c0_i32_0 : i32, i32, i32
  }
  func.func @transform_6(%arg0: i32) -> (i32, i32) {
    %c0_i32 = arith.constant 0 : i32
    %c0_i32_0 = arith.constant 0 : i32
    %c0_i32_1 = arith.constant 0 : i32
    return %c0_i32, %c0_i32_0 : i32, i32
  }
}

</mosaic_0001>

<llo_original>
// kernel: i2gcn_forward.1
$region0: #{i2gcn_forward.1}
  #allocation0 [shape = 'u32[]', space=smem, size = 0x4, offset = 0x4, fixed_abs, tag = 'smem constant byte address 0x4 - core index']
  #allocation1 [shape = 'u32[144,128]{1,0:T(1,128)}', space=vmem, size = 0x12000, scoped, tag = 'internal scratch']
  #allocation2 [shape = 'f32[16,128]{1,0:T(8,128)}', space=vmem, size = 0x2000, scoped, tag = 'scratch operand']
  #allocation3 [shape = 'f32[16,16]{1,0:T(8,128)}', space=vmem, size = 0x2000, scoped, tag = 'scratch operand']
  %s0 = inlined_call_operand.vmem [shape: f32[16,1], index: 0, kind: input, shape index: {}]
  %s1 = inlined_call_operand.vmem [shape: f32[1,16], index: 1, kind: input, shape index: {}]
  %s2 = inlined_call_operand.vmem [shape: f32[16,128], index: 2, kind: input, shape index: {}]
  %s3 = inlined_call_operand.hbm [shape: f32[2,128,128], index: 3, kind: input, shape index: {}]
  %s4 = inlined_call_operand.hbm [shape: f32[2,128,128], index: 4, kind: input, shape index: {}]
  %s5 = inlined_call_operand.vmem [shape: f32[2,1,128], index: 5, kind: input, shape index: {}]
  %s6 = inlined_call_operand.hbm [shape: f32[16,128], index: 6, kind: output, shape index: {}]
  %s7 = sld [smem:[#allocation0]]
  $region73: #{i2gcn_forward.1} parent=0
    _
  %s9 = ssub.s32 1, %s7
  %s10 = scalar_select 0, %s9, %s7
  $region1: #{i2gcn_forward.1} parent=0
    #allocation4 [shape = 'u8[131072]{0}', space=vmem, size = 0x20000, scoped, tag = 'input window, operand 3']
    #allocation5 [shape = 's32[2]{0}', space=sflag, size = 0x8, scoped, tag = 'scoped memory for i2gcn_forward.1']
    #allocation6 [shape = 's32[2]{0}', space=sflag, size = 0x8, scoped, tag = 'scoped memory for i2gcn_forward.1']
    #allocation7 [shape = 'u8[131072]{0}', space=vmem, size = 0x20000, scoped, tag = 'input window, operand 4']
    #allocation8 [shape = 's32[2]{0}', space=sflag, size = 0x8, scoped, tag = 'scoped memory for i2gcn_forward.1']
    #allocation9 [shape = 'u8[8192]{0}', space=vmem, size = 0x2000, scoped, tag = 'output window, operand 0, single buffered']
    %11 = vsyncpa [#allocation5], 0
    %s12 = scalar_lea.sflag [#allocation5], 1
    %13 = vsyncpa %s12, 0
    %14 = vsyncpa [#allocation8], 0
    %s15 = scalar_lea.sflag [#allocation8], 1
    %16 = vsyncpa %s15, 0
    %17 = vsyncpa [#allocation6], 0
    loop: start=0, step=1, limit=4
    $region2: #{i2gcn_forward.1} parent=1 // loop_pre_header
      _
    $region3: #{i2gcn_forward.1} parent=1 // loop_header
      %s19 = sphi 0, %s23
      %p20 = scmp.ge.s32.totalorder %s19, 4
      %s27 = sphi 0, %s27
      %s29 = sphi 0, %s27
      %s30 = sphi 0, %s29
      %s44 = sphi 0, %s30
      %s48 = sphi 0, %s48
      %s50 = sphi 0, %s48
      %s51 = sphi 0, %s50
      %s65 = sphi 0, %s51
      %s69 = sphi 0, %s69
      %s71 = sphi 0, %s69
      %s72 = sphi 0, %s71
      %s86 = sphi 0, %s72
      %s92 = sphi 0, %s94
      %s95 = sphi 0, %s92
      %s96 = sphi 0, %s95
      %s112 = sphi 0, %s96
      %s118 = sphi 0, %s120
      %s121 = sphi 0, %s118
      %s122 = sphi 0, %s121
      %s138 = sphi 0, %s122
      %s144 = sphi 0, %s146
      %s147 = sphi 0, %s144
      %s148 = sphi 0, %s147
      %s164 = sphi 0, %s148
      %s168 = sphi 0, %s168
      %s170 = sphi 0, %s168
      %s171 = sphi 0, %s170
      %s185 = sphi 0, %s171
    $region4: #{i2gcn_forward.1} parent=1 // loop_header_branch
      %22 = sbr.rel (%p20) target = $region8
    $region5: #{i2gcn_forward.1} parent=1 // loop_body
      %s24 = ssub.s32 %s19, 1
      %s25 = ssub.s32 %s19, 2
      %s26 = sadd.s32 %s19, 1
      %s28 = sadd.s32 %s27, 1
      %p31 = scmp.eq.s32.totalorder %s19, 1
      %p32 = scmp.ne.s32.totalorder %s27, %s29
      %p33 = scmp.eq.s32.totalorder %s19, 0
      %p34 = por %p32, %p33
      %p35 = scmp.ne.s32.totalorder %s27, %s29
      %p36 = scmp.eq.s32.totalorder %s24, 1
      %p37 = por %p35, %p36
      %p38 = scmp.ne.s32.totalorder %s29, %s30
      %p39 = scmp.eq.s32.totalorder %s24, 0
      %p40 = por %p38, %p39
      %p41 = scmp.ne.s32.totalorder %s29, %s30
      %p42 = scmp.eq.s32.totalorder %s25, 1
      %p43 = por %p41, %p42
      %p45 = scmp.ne.s32.totalorder %s30, %s44
      %p46 = scmp.eq.s32.totalorder %s25, 0
      %p47 = por %p45, %p46
      %s49 = sadd.s32 %s48, 1
      %p52 = scmp.eq.s32.totalorder %s19, 1
      %p53 = scmp.ne.s32.totalorder %s48, %s50
      %p54 = scmp.eq.s32.totalorder %s19, 0
      %p55 = por %p53, %p54
      %p56 = scmp.ne.s32.totalorder %s48, %s50
      %p57 = scmp.eq.s32.totalorder %s24, 1
      %p58 = por %p56, %p57
      %p59 = scmp.ne.s32.totalorder %s50, %s51
      %p60 = scmp.eq.s32.totalorder %s24, 0
      %p61 = por %p59, %p60
      %p62 = scmp.ne.s32.totalorder %s50, %s51
      %p63 = scmp.eq.s32.totalorder %s25, 1
      %p64 = por %p62, %p63
      %p66 = scmp.ne.s32.totalorder %s51, %s65
      %p67 = scmp.eq.s32.totalorder %s25, 0
      %p68 = por %p66, %p67
      %s70 = sadd.s32 %s69, 1
      %p73 = scmp.eq.s32.totalorder %s19, 1
      %p74 = scmp.ne.s32.totalorder %s69, %s71
      %p75 = scmp.eq.s32.totalorder %s19, 0
      %p76 = por %p74, %p75
      %p77 = scmp.ne.s32.totalorder %s69, %s71
      %p78 = scmp.eq.s32.totalorder %s24, 1
      %p79 = por %p77, %p78
      %p80 = scmp.ne.s32.totalorder %s71, %s72
      %p81 = scmp.eq.s32.totalorder %s24, 0
      %p82 = por %p80, %p81
      %p83 = scmp.ne.s32.totalorder %s71, %s72
      %p84 = scmp.eq.s32.totalorder %s25, 1
      %p85 = por %p83, %p84
      %p87 = scmp.ne.s32.totalorder %s72, %s86
      %p88 = scmp.eq.s32.totalorder %s25, 0
      %p89 = por %p87, %p88
      %s90 = ssub.s32 %s19, %s26
      %p91 = scmp.eq.s32.totalorder %s90, 0
      %s93 = sadd.s32 %s92, 1
      %s94 = scalar_select %p91, %s92, %s93
      %p97 = pneg %p91
      %p98 = scmp.eq.s32.totalorder %s19, 1
      %p99 = por %p97, %p98
      %p100 = scmp.ne.s32.totalorder %s92, %s95
      %p101 = scmp.eq.s32.totalorder %s19, 0
      %p102 = por %p100, %p101
      %p103 = scmp.ne.s32.totalorder %s92, %s95
      %p104 = scmp.eq.s32.totalorder %s24, 1
      %p105 = por %p103, %p104
      %p106 = scmp.ne.s32.totalorder %s95, %s96
      %p107 = scmp.eq.s32.totalorder %s24, 0
      %p108 = por %p106, %p107
      %p109 = scmp.ne.s32.totalorder %s95, %s96
      %p110 = scmp.eq.s32.totalorder %s25, 1
      %p111 = por %p109, %p110
      %p113 = scmp.ne.s32.totalorder %s96, %s112
      %p114 = scmp.eq.s32.totalorder %s25, 0
      %p115 = por %p113, %p114
      %s116 = ssub.s32 %s19, %s26
      %p117 = scmp.eq.s32.totalorder %s116, 0
      %s119 = sadd.s32 %s118, 1
      %s120 = scalar_select %p117, %s118, %s119
      %p123 = pneg %p117
      %p124 = scmp.eq.s32.totalorder %s19, 1
      %p125 = por %p123, %p124
      %p126 = scmp.ne.s32.totalorder %s118, %s121
      %p127 = scmp.eq.s32.totalorder %s19, 0
      %p128 = por %p126, %p127
      %p129 = scmp.ne.s32.totalorder %s118, %s121
      %p130 = scmp.eq.s32.totalorder %s24, 1
      %p131 = por %p129, %p130
      %p132 = scmp.ne.s32.totalorder %s121, %s122
      %p133 = scmp.eq.s32.totalorder %s24, 0
      %p134 = por %p132, %p133
      %p135 = scmp.ne.s32.totalorder %s121, %s122
      %p136 = scmp.eq.s32.totalorder %s25, 1
      %p137 = por %p135, %p136
      %p139 = scmp.ne.s32.totalorder %s122, %s138
      %p140 = scmp.eq.s32.totalorder %s25, 0
      %p141 = por %p139, %p140
      %s142 = ssub.s32 %s19, %s26
      %p143 = scmp.eq.s32.totalorder %s142, 0
      %s145 = sadd.s32 %s144, 1
      %s146 = scalar_select %p143, %s144, %s145
      %p149 = pneg %p143
      %p150 = scmp.eq.s32.totalorder %s19, 1
      %p151 = por %p149, %p150
      %p152 = scmp.ne.s32.totalorder %s144, %s147
      %p153 = scmp.eq.s32.totalorder %s19, 0
      %p154 = por %p152, %p153
      %p155 = scmp.ne.s32.totalorder %s144, %s147
      %p156 = scmp.eq.s32.totalorder %s24, 1
      %p157 = por %p155, %p156
      %p158 = scmp.ne.s32.totalorder %s147, %s148
      %p159 = scmp.eq.s32.totalorder %s24, 0
      %p160 = por %p158, %p159
      %p161 = scmp.ne.s32.totalorder %s147, %s148
      %p162 = scmp.eq.s32.totalorder %s25, 1
      %p163 = por %p161, %p162
      %p165 = scmp.ne.s32.totalorder %s148, %s164
      %p166 = scmp.eq.s32.totalorder %s25, 0
      %p167 = por %p165, %p166
      %s169 = sadd.s32 %s168, 1
      %p172 = scmp.eq.s32.totalorder %s19, 1
      %p173 = scmp.ne.s32.totalorder %s168, %s170
      %p174 = scmp.eq.s32.totalorder %s19, 0
      %p175 = por %p173, %p174
      %p176 = scmp.ne.s32.totalorder %s168, %s170
      %p177 = scmp.eq.s32.totalorder %s24, 1
      %p178 = por %p176, %p177
      %p179 = scmp.ne.s32.totalorder %s170, %s171
      %p180 = scmp.eq.s32.totalorder %s24, 0
      %p181 = por %p179, %p180
      %p182 = scmp.ne.s32.totalorder %s170, %s171
      %p183 = scmp.eq.s32.totalorder %s25, 1
      %p184 = por %p182, %p183
      %p186 = scmp.ne.s32.totalorder %s171, %s185
      %p187 = scmp.eq.s32.totalorder %s25, 0
      %p188 = por %p186, %p187
      %p189 = scmp.le.s32.totalorder 1, %s19
      %p190 = scmp.lt.s32.totalorder %s19, 3
      %p191 = pnand %p189, %p190
      %p192 = pneg %p191
      // Predicated region
      $region9: #{i2gcn_forward.1} parent=5 // pred_check
        _
      $region10: #{i2gcn_forward.1} parent=5 // pred_check_branch
        %194 = sbr.rel (%p191) target = $region12
      $region11: #{i2gcn_forward.1} parent=5 // pred_region
        %s195 = ssub.s32 %s19, 1
        // Predicated region
        $region13: #{i2gcn_forward.1} parent=11 // pred_check
          %p196 = pneg %p40
        $region14: #{i2gcn_forward.1} parent=11 // pred_check_branch
          %198 = sbr.rel (%p196) target = $region16
        $region15: #{i2gcn_forward.1} parent=11 // pred_region
          _
        $region16: #{i2gcn_forward.1} parent=11 // pred_fallthru
          _
        // Predicated region
        $region17: #{i2gcn_forward.1} parent=11 // pred_check
          %p199 = pneg %p61
        $region18: #{i2gcn_forward.1} parent=11 // pred_check_branch
          %201 = sbr.rel (%p199) target = $region20
        $region19: #{i2gcn_forward.1} parent=11 // pred_region
          _
        $region20: #{i2gcn_forward.1} parent=11 // pred_fallthru
          _
        // Predicated region
        $region21: #{i2gcn_forward.1} parent=11 // pred_check
          %p202 = pneg %p82
        $region22: #{i2gcn_forward.1} parent=11 // pred_check_branch
          %204 = sbr.rel (%p202) target = $region24
        $region23: #{i2gcn_forward.1} parent=11 // pred_region
          _
        $region24: #{i2gcn_forward.1} parent=11 // pred_fallthru
          _
      $region12: #{i2gcn_forward.1} parent=5 // pred_fallthru
        _
      %p205 = scmp.lt.s32.totalorder %s19, 2
      // Predicated region
      $region25: #{i2gcn_forward.1} parent=5 // pred_check
        %p206 = pneg %p205
      $region26: #{i2gcn_forward.1} parent=5 // pred_check_branch
        %208 = sbr.rel (%p206) target = $region28
      $region27: #{i2gcn_forward.1} parent=5 // pred_region
        // Predicated region
        $region29: #{i2gcn_forward.1} parent=27 // pred_check
          %p209 = pneg %p102
        $region30: #{i2gcn_forward.1} parent=27 // pred_check_branch
          %211 = sbr.rel (%p209) target = $region32
        $region31: #{i2gcn_forward.1} parent=27 // pred_region
          %s212 = sand.u32 %s92, 1
          %s213 = scalar_lea.sflag [#allocation5], %s212
          %s214 = sand.u32 %s92, 1
          %s215 = smul.addr %s214, 128
          %s216 = scalar_lea.vmem [#allocation4], %s215
          %s218 = ssub.s32 2048, 2048
          %219 = vsyncadd %s213, %s218
          %s220 = smul.addr %s19, 16
          %s221 = smul.addr %s220, 128
          %s222 = scalar_lea.hbm %s3, %s221
          %s223 = sshll.u32 %s216, 4
          %s224 = int_to_ptr.vmem [resolvable:$true] %s223
          %229 = dma.hbm_to_vmem [thread:$0]  %s222, 2048, %s224, %s213, 128, 128, 8
        $region32: #{i2gcn_forward.1} parent=27 // pred_fallthru
          _
        // Predicated region
        $region33: #{i2gcn_forward.1} parent=27 // pred_check
          %p230 = pneg %p128
        $region34: #{i2gcn_forward.1} parent=27 // pred_check_branch
          %232 = sbr.rel (%p230) target = $region36
        $region35: #{i2gcn_forward.1} parent=27 // pred_region
          %s233 = sand.u32 %s118, 1
          %s234 = scalar_lea.sflag [#allocation8], %s233
          %s235 = sand.u32 %s118, 1
          %s236 = smul.addr %s235, 128
          %s237 = scalar_lea.vmem [#allocation7], %s236
          %s239 = ssub.s32 2048, 2048
          %240 = vsyncadd %s234, %s239
          %s241 = smul.addr %s19, 16
          %s242 = smul.addr %s241, 128
          %s243 = scalar_lea.hbm %s4, %s242
          %s244 = sshll.u32 %s237, 4
          %s245 = int_to_ptr.vmem [resolvable:$true] %s244
          %250 = dma.hbm_to_vmem [thread:$0]  %s243, 2048, %s245, %s234, 128, 128, 8
        $region36: #{i2gcn_forward.1} parent=27 // pred_fallthru
          _
        // Predicated region
        $region37: #{i2gcn_forward.1} parent=27 // pred_check
          %p251 = pneg %p154
        $region38: #{i2gcn_forward.1} parent=27 // pred_check_branch
          %253 = sbr.rel (%p251) target = $region40
        $region39: #{i2gcn_forward.1} parent=27 // pred_region
          %p254 = scmp.lt.s32.totalorder %s19, 1
          %s255 = scalar_select %p254, %s19, 1
          %s256 = scalar_lea.vmem %s5, %s255
        $region40: #{i2gcn_forward.1} parent=27 // pred_fallthru
          _
      $region28: #{i2gcn_forward.1} parent=5 // pred_fallthru
        _
      %p257 = scmp.le.s32.totalorder 1, %s19
      %p258 = scmp.lt.s32.totalorder %s19, 3
      %p259 = pnand %p257, %p258
      %p260 = pneg %p259
      // Predicated region
      $region41: #{i2gcn_forward.1} parent=5 // pred_check
        _
      $region42: #{i2gcn_forward.1} parent=5 // pred_check_branch
        %262 = sbr.rel (%p259) target = $region44
      $region43: #{i2gcn_forward.1} parent=5 // pred_region
        %s263 = ssub.s32 %s19, 1
        %s264 = sand.u32 %s95, 1
        %s265 = scalar_lea.sflag [#allocation5], %s264
        %s266 = sand.u32 %s95, 1
        %s267 = smul.addr %s266, 128
        %s268 = scalar_lea.vmem [#allocation4], %s267
        // Predicated region
        $region45: #{i2gcn_forward.1} parent=43 // pred_check
          %p269 = pneg %p108
        $region46: #{i2gcn_forward.1} parent=43 // pred_check_branch
          %271 = sbr.rel (%p269) target = $region48
        $region47: #{i2gcn_forward.1} parent=43 // pred_region
          %272 = dma.done %s265, 2048
        $region48: #{i2gcn_forward.1} parent=43 // pred_fallthru
          _
        %s273 = sand.u32 %s121, 1
        %s274 = scalar_lea.sflag [#allocation8], %s273
        %s275 = sand.u32 %s121, 1
        %s276 = smul.addr %s275, 128
        %s277 = scalar_lea.vmem [#allocation7], %s276
        // Predicated region
        $region49: #{i2gcn_forward.1} parent=43 // pred_check
          %p278 = pneg %p134
        $region50: #{i2gcn_forward.1} parent=43 // pred_check_branch
          %280 = sbr.rel (%p278) target = $region52
        $region51: #{i2gcn_forward.1} parent=43 // pred_region
          %281 = dma.done %s274, 2048
        $region52: #{i2gcn_forward.1} parent=43 // pred_fallthru
          _
        %p282 = pneg %p40
        %p283 = pneg %p37
        %p284 = pneg %p61
        %p285 = pneg %p58
        %p286 = pneg %p82
        %p287 = pneg %p79
        %s288 = sand.u32 %s95, 1
        %s289 = scalar_lea.sflag [#allocation5], %s288
        %s290 = sand.u32 %s95, 1
        %s291 = smul.addr %s290, 128
        %s292 = scalar_lea.vmem [#allocation4], %s291
        %p293 = pneg %p108
        %p294 = pneg %p105
        %s295 = sand.u32 %s121, 1
        %s296 = scalar_lea.sflag [#allocation8], %s295
        %s297 = sand.u32 %s121, 1
        %s298 = smul.addr %s297, 128
        %s299 = scalar_lea.vmem [#allocation7], %s298
        %p300 = pneg %p134
        %p301 = pneg %p131
        %p302 = scmp.lt.s32.totalorder %s24, 1
        %s303 = scalar_select %p302, %s24, 1
        %s304 = scalar_lea.vmem %s5, %s303
        %p305 = pneg %p160
        %p306 = pneg %p157
        %p307 = pneg %p181
        %p308 = pneg %p178
        %p309 = scmp.lt.s32.totalorder %s24, 1
        %s310 = scalar_select %p309, %s24, 1
        %s311 = scalar_lea.vmem %s5, %s310
        %v312 = vlaneseq
        %v313 = vshrl.u32 %v312, 7
        %v314 = vadd.s32 %v313, 8
        %v315 = vlaneseq
        %v316 = vand.u32 %v315, 127
        %vm317 = vcmp.eq.s32.totalorder %v313, %v316
        %vm318 = vcmp.eq.s32.totalorder %v314, %v316
        %v319 = vsel %vm317, 1.0, 0.0
        %v320 = vsel %vm318, 1.0, 0.0
        %p321 = scmp.eq.s32.totalorder %s24, 0
        // Predicated region
        $region53: #{i2gcn_forward.1} parent=43 // pred_check
          %p322 = pneg %p321
        $region54: #{i2gcn_forward.1} parent=43 // pred_check_branch
          %324 = sbr.rel (%p322) target = $region56
        $region55: #{i2gcn_forward.1} parent=43 // pred_region
          %v325 = vld [vmem:[%s2] sm:$0xff]
          %v326 = vld [vmem:[%s2 + $0x8] sm:$0xff]
          %327 = vst [vmem:[#allocation2] sm:$0xff] %v325
          %328 = vst [vmem:[#allocation2 + $0x8] sm:$0xff] %v326
          %v329 = vld [vmem:[%s0] sm:$0xff]
          %v330 = vld [vmem:[%s0 + $0x8] sm:$0xff]
          %v331 = vld [vmem:[%s1] sm:$0x1]
          %333 = vset.pattern.permute.xlu0 0
          %334 = vperm.xlu0 %333, %v329
          %v335 = vpop.permute.xlu0 %334
          %338 = vset.pattern.permute.xlu0 0
          %339 = vperm.xlu0 %338, %v330
          %v340 = vpop.permute.xlu0 %339
          %v343 = vlaneseq
          %v344 = vshrl.u32 %v343, 7
          %v345 = vsub.s32 0, %v344
          %v346 = vrot.slane %v331, %v345
          %v348 = vsub.f32 %v335, %v346
          %v349 = vsub.f32 %v340, %v346
          %v350 = vmul.f32 %v348, %v348
          %v351 = vmul.f32 %v349, %v349
          %v352 = vsub.f32 0.0, %v350
          %v353 = vsub.f32 0.0, %v351
          %v354 = vrcp.pop 32.0
          %v355 = vmul.f32 %v352, %v354
          %v356 = vmul.f32 %v353, %v354
          %v357 = vmul.f32 %v355, 1.442695
          %v358 = vpow.pop %v357
          %v359 = vmul.f32 %v356, 1.442695
          %v360 = vpow.pop %v359
          %v361 = vadd.f32 %v358, %v319
          %v362 = vadd.f32 %v360, %v320
          %vm363 = vcmask 130048
          %v364 = vsel %vm363, %v361, 0.0
          %365 = vadd.xlane.f32.xlu0 %v364
          %v366 = vpop.xlane.xlu0 %365
          %v367 = vsel %vm363, %v362, 0.0
          %368 = vadd.xlane.f32.xlu0 %v367
          %v369 = vpop.xlane.xlu0 %368
          %v370 = vrcp.pop %v366
          %v371 = vmul.f32 %v361, %v370
          %v372 = vrcp.pop %v369
          %v373 = vmul.f32 %v362, %v372
          %374 = vst.msk [vmem:[#allocation3] sm:$0xff] %vm363, %v371
          %375 = vst.msk [vmem:[#allocation3 + $0x8] sm:$0xff] %vm363, %v373
        $region56: #{i2gcn_forward.1} parent=43 // pred_fallthru
          _
        %v376 = vld [vmem:[#allocation2] sm:$0xff]
        %v377 = vld [vmem:[#allocation2 + $0x8] sm:$0xff]
        %v378 = vmul.f32 %v376, %v376
        %v379 = vmul.f32 %v377, %v377
        %380 = vadd.xlane.f32.xlu0 %v378
        %v381 = vpop.xlane.xlu0 %380
        %382 = vadd.xlane.f32.xlu0 %v379
        %v383 = vpop.xlane.xlu0 %382
        %v384 = vadd.f32 %v381, 1e-12
        %v385 = vadd.f32 %v383, 1e-12
        %v386 = vrsqrt.pop %v384
        %v387 = vrsqrt.pop %v385
        %v388 = vmul.f32 %v376, %v386
        %v389 = vmul.f32 %v377, %v387
        %390 = vmatprep.subr.mxu0 0.0
        %391 = vmatpush1.xpose.msra.mxu0 %v388
        %392 = vmatprep.subr.mxu0 0.0
        %393 = vmatpush1.xpose.msra.mxu0 %v389
        %394 = vmatprep.subr.mxu0 0.0
        %395 = vmatpush1.xpose.msra.mxu0 0.0
        %396 = vmatprep.subr.mxu0 0.0
        %397 = vmatpush1.xpose.msra.mxu0 0.0
        %398 = vmatprep.subr.mxu0 0.0
        %399 = vmatpush1.xpose.msra.mxu0 0.0
        %400 = vmatprep.subr.mxu0 0.0
        %401 = vmatpush1.xpose.msra.mxu0 0.0
        %402 = vmatprep.subr.mxu0 0.0
        %403 = vmatpush1.xpose.msra.mxu0 0.0
        %404 = vmatprep.subr.mxu0 0.0
        %405 = vmatpush1.xpose.msra.mxu0 0.0
        %406 = vmatprep.subr.mxu0 0.0
        %407 = vmatpush1.xpose.msra.mxu0 0.0
        %408 = vmatprep.subr.mxu0 0.0
        %409 = vmatpush1.xpose.msra.mxu0 0.0
        %410 = vmatprep.subr.mxu0 0.0
        %411 = vmatpush1.xpose.msra.mxu0 0.0
        %412 = vmatprep.subr.mxu0 0.0
        %413 = vmatpush1.xpose.msra.mxu0 0.0
        %414 = vmatprep.subr.mxu0 0.0
        %415 = vmatpush1.xpose.msra.mxu0 0.0
        %416 = vmatprep.subr.mxu0 0.0
        %417 = vmatpush1.xpose.msra.mxu0 0.0
        %418 = vmatprep.subr.mxu0 0.0
        %419 = vmatpush1.xpose.msra.mxu0 0.0
        %420 = vmatprep.subr.mxu0 0.0
        %421 = vmatpush1.xpose.msra.mxu0 0.0
        %422 = vmatprep.subr.mxu0 0.0
        %423 = vmatpush1.xpose.msra.mxu0 0.0
        %424 = vmatprep.subr.mxu0 0.0
        %425 = vmatpush1.xpose.msra.mxu0 0.0
        %426 = vmatprep.subr.mxu0 0.0
        %427 = vmatpush1.xpose.msra.mxu0 0.0
        %428 = vmatprep.subr.mxu0 0.0
        %429 = vmatpush1.xpose.msra.mxu0 0.0
        %430 = vmatprep.subr.mxu0 0.0
        %431 = vmatpush1.xpose.msra.mxu0 0.0
        %432 = vmatprep.subr.mxu0 0.0
        %433 = vmatpush1.xpose.msra.mxu0 0.0
        %434 = vmatprep.subr.mxu0 0.0
        %435 = vmatpush1.xpose.msra.mxu0 0.0
        %436 = vmatprep.subr.mxu0 0.0
        %437 = vmatpush1.xpose.msra.mxu0 0.0
        %438 = vmatprep.subr.mxu0 0.0
        %439 = vmatpush1.xpose.msra.mxu0 0.0
        %440 = vmatprep.subr.mxu0 0.0
        %441 = vmatpush1.xpose.msra.mxu0 0.0
        %442 = vmatprep.subr.mxu0 0.0
        %443 = vmatpush1.xpose.msra.mxu0 0.0
        %444 = vmatprep.subr.mxu0 0.0
        %445 = vmatpush1.xpose.msra.mxu0 0.0
        %446 = vmatprep.subr.mxu0 0.0
        %447 = vmatpush1.xpose.msra.mxu0 0.0
        %448 = vmatprep.subr.mxu0 0.0
        %449 = vmatpush1.xpose.msra.mxu0 0.0
        %450 = vmatprep.subr.mxu0 0.0
        %451 = vmatpush1.xpose.msra.mxu0 0.0
        %452 = vmatprep.subr.mxu0 0.0
        %453 = vmatpush1.xpose.msra.mxu0 0.0
        %454 = vmatprep.mubr.f32.mxu0 0.0
        %455 = vmatmul.mubr.f32.gmra.mrb[0].mxu0 %v388
        %v456 = vpop.f32.mrb[0].mxu0
        %v457 = vadd.f32 0.0, %v456
        %v458 = vpop.f32.mrb[0].mxu0
        %459 = vmatprep.mubr.f32.mxu0 0.0
        %460 = vmatmul.mubr.f32.gmra.mrb[0].mxu0 %v389
        %v461 = vpop.f32.mrb[0].mxu0
        %v462 = vadd.f32 0.0, %v461
        %v463 = vpop.f32.mrb[0].mxu0
        %464 = vdwg.mxu0
        %v467 = vcombine.high %v457, %v457
        %v469 = vunpack.c.l.s4 1966171168
        %v470 = vunpack.c.0.s8 %v469
        %v471 = vlaneseq
        %v472 = vshrl.u32 %v471, 7
        %v473 = vsub.s32 %v470, %v472
        %v474 = vrot.slane %v457, %v473
        %v476 = vunpack.c.l.s4 1966171168
        %v477 = vunpack.c.0.s8 %v476
        %v478 = vlaneseq
        %v479 = vshrl.u32 %v478, 7
        %v480 = vsub.s32 %v477, %v479
        %v481 = vrot.slane %v467, %v480
        %v482 = vcombine.high %v474, %v474
        %v483 = vcombine.high %v481, %v481
        %v485 = vunpack.c.l.s4 1966171168
        %v486 = vunpack.c.0.s8 %v485
        %v487 = vlaneseq
        %v488 = vshrl.u32 %v487, 7
        %v489 = vsub.s32 %v486, %v488
        %v490 = vrot.slane %v474, %v489
        %v492 = vunpack.c.l.s4 1966171168
        %v493 = vunpack.c.0.s8 %v492
        %v494 = vlaneseq
        %v495 = vshrl.u32 %v494, 7
        %v496 = vsub.s32 %v493, %v495
        %v497 = vrot.slane %v481, %v496
        %v499 = vunpack.c.l.s4 1966171168
        %v500 = vunpack.c.0.s8 %v499
        %v501 = vlaneseq
        %v502 = vshrl.u32 %v501, 7
        %v503 = vsub.s32 %v500, %v502
        %v504 = vrot.slane %v482, %v503
        %v506 = vunpack.c.l.s4 1966171168
        %v507 = vunpack.c.0.s8 %v506
        %v508 = vlaneseq
        %v509 = vshrl.u32 %v508, 7
        %v510 = vsub.s32 %v507, %v509
        %v511 = vrot.slane %v483, %v510
        %v512 = vcombine.high %v490, %v490
        %v513 = vcombine.high %v497, %v497
        %v514 = vcombine.high %v504, %v504
        %v515 = vcombine.high %v511, %v511
        %v516 = vcombine.high %v462, %v462
        %v518 = vunpack.c.l.s4 1966171168
        %v519 = vunpack.c.0.s8 %v518
        %v520 = vlaneseq
        %v521 = vshrl.u32 %v520, 7
        %v522 = vsub.s32 %v519, %v521
        %v523 = vrot.slane %v462, %v522
        %v525 = vunpack.c.l.s4 1966171168
        %v526 = vunpack.c.0.s8 %v525
        %v527 = vlaneseq
        %v528 = vshrl.u32 %v527, 7
        %v529 = vsub.s32 %v526, %v528
        %v530 = vrot.slane %v516, %v529
        %v531 = vcombine.high %v523, %v523
        %v532 = vcombine.high %v530, %v530
        %v534 = vunpack.c.l.s4 1966171168
        %v535 = vunpack.c.0.s8 %v534
        %v536 = vlaneseq
        %v537 = vshrl.u32 %v536, 7
        %v538 = vsub.s32 %v535, %v537
        %v539 = vrot.slane %v523, %v538
        %v541 = vunpack.c.l.s4 1966171168
        %v542 = vunpack.c.0.s8 %v541
        %v543 = vlaneseq
        %v544 = vshrl.u32 %v543, 7
        %v545 = vsub.s32 %v542, %v544
        %v546 = vrot.slane %v530, %v545
        %v548 = vunpack.c.l.s4 1966171168
        %v549 = vunpack.c.0.s8 %v548
        %v550 = vlaneseq
        %v551 = vshrl.u32 %v550, 7
        %v552 = vsub.s32 %v549, %v551
        %v553 = vrot.slane %v531, %v552
        %v555 = vunpack.c.l.s4 1966171168
        %v556 = vunpack.c.0.s8 %v555
        %v557 = vlaneseq
        %v558 = vshrl.u32 %v557, 7
        %v559 = vsub.s32 %v556, %v558
        %v560 = vrot.slane %v532, %v559
        %v561 = vcombine.high %v539, %v539
        %v562 = vcombine.high %v546, %v546
        %v563 = vcombine.high %v553, %v553
        %v564 = vcombine.high %v560, %v560
        %v565 = vlaneseq
        %v566 = vshrl.u32 %v565, 7
        %v567 = vsub.s32 0, %v566
        %v568 = vrot.slane %v457, %v567
        %570 = vbcast.lane.b32.xlu0 %v568, 256
        %v571 = vpop.permute.xlu0 %570
        %s573 = sor.u32 256, 8
        %574 = vbcast.lane.b32.xlu0 %v568, %s573
        %v575 = vpop.permute.xlu0 %574
        %v576 = vlaneseq
        %v577 = vshrl.u32 %v576, 7
        %v578 = vsub.s32 1, %v577
        %v579 = vrot.slane %v457, %v578
        %581 = vbcast.lane.b32.xlu0 %v579, 256
        %v582 = vpop.permute.xlu0 %581
        %s584 = sor.u32 256, 8
        %585 = vbcast.lane.b32.xlu0 %v579, %s584
        %v586 = vpop.permute.xlu0 %585
        %v587 = vlaneseq
        %v588 = vshrl.u32 %v587, 7
        %v589 = vsub.s32 2, %v588
        %v590 = vrot.slane %v457, %v589
        %592 = vbcast.lane.b32.xlu0 %v590, 256
        %v593 = vpop.permute.xlu0 %592
        %s595 = sor.u32 256, 8
        %596 = vbcast.lane.b32.xlu0 %v590, %s595
        %v597 = vpop.permute.xlu0 %596
        %v598 = vlaneseq
        %v599 = vshrl.u32 %v598, 7
        %v600 = vsub.s32 3, %v599
        %v601 = vrot.slane %v457, %v600
        %603 = vbcast.lane.b32.xlu0 %v601, 256
        %v604 = vpop.permute.xlu0 %603
        %s606 = sor.u32 256, 8
        %607 = vbcast.lane.b32.xlu0 %v601, %s606
        %v608 = vpop.permute.xlu0 %607
        %v609 = vlaneseq
        %v610 = vshrl.u32 %v609, 7
        %v611 = vsub.s32 4, %v610
        %v612 = vrot.slane %v457, %v611
        %614 = vbcast.lane.b32.xlu0 %v612, 256
        %v615 = vpop.permute.xlu0 %614
        %s617 = sor.u32 256, 8
        %618 = vbcast.lane.b32.xlu0 %v612, %s617
        %v619 = vpop.permute.xlu0 %618
        %v620 = vlaneseq
        %v621 = vshrl.u32 %v620, 7
        %v622 = vsub.s32 5, %v621
        %v623 = vrot.slane %v457, %v622
        %625 = vbcast.lane.b32.xlu0 %v623, 256
        %v626 = vpop.permute.xlu0 %625
        %s628 = sor.u32 256, 8
        %629 = vbcast.lane.b32.xlu0 %v623, %s628
        %v630 = vpop.permute.xlu0 %629
        %v631 = vlaneseq
        %v632 = vshrl.u32 %v631, 7
        %v633 = vsub.s32 6, %v632
        %v634 = vrot.slane %v457, %v633
        %636 = vbcast.lane.b32.xlu0 %v634, 256
        %v637 = vpop.permute.xlu0 %636
        %s639 = sor.u32 256, 8
        %640 = vbcast.lane.b32.xlu0 %v634, %s639
        %v641 = vpop.permute.xlu0 %640
        %v642 = vlaneseq
        %v643 = vshrl.u32 %v642, 7
        %v644 = vsub.s32 7, %v643
        %v645 = vrot.slane %v457, %v644
        %647 = vbcast.lane.b32.xlu0 %v645, 256
        %v648 = vpop.permute.xlu0 %647
        %s650 = sor.u32 256, 8
        %651 = vbcast.lane.b32.xlu0 %v645, %s650
        %v652 = vpop.permute.xlu0 %651
        %v653 = vlaneseq
        %v654 = vshrl.u32 %v653, 7
        %v655 = vsub.s32 0, %v654
        %v656 = vrot.slane %v462, %v655
        %658 = vbcast.lane.b32.xlu0 %v656, 256
        %v659 = vpop.permute.xlu0 %658
        %s661 = sor.u32 256, 8
        %662 = vbcast.lane.b32.xlu0 %v656, %s661
        %v663 = vpop.permute.xlu0 %662
        %v664 = vlaneseq
        %v665 = vshrl.u32 %v664, 7
        %v666 = vsub.s32 1, %v665
        %v667 = vrot.slane %v462, %v666
        %669 = vbcast.lane.b32.xlu0 %v667, 256
        %v670 = vpop.permute.xlu0 %669
        %s672 = sor.u32 256, 8
        %673 = vbcast.lane.b32.xlu0 %v667, %s672
        %v674 = vpop.permute.xlu0 %673
        %v675 = vlaneseq
        %v676 = vshrl.u32 %v675, 7
        %v677 = vsub.s32 2, %v676
        %v678 = vrot.slane %v462, %v677
        %680 = vbcast.lane.b32.xlu0 %v678, 256
        %v681 = vpop.permute.xlu0 %680
        %s683 = sor.u32 256, 8
        %684 = vbcast.lane.b32.xlu0 %v678, %s683
        %v685 = vpop.permute.xlu0 %684
        %v686 = vlaneseq
        %v687 = vshrl.u32 %v686, 7
        %v688 = vsub.s32 3, %v687
        %v689 = vrot.slane %v462, %v688
        %691 = vbcast.lane.b32.xlu0 %v689, 256
        %v692 = vpop.permute.xlu0 %691
        %s694 = sor.u32 256, 8
        %695 = vbcast.lane.b32.xlu0 %v689, %s694
        %v696 = vpop.permute.xlu0 %695
        %v697 = vlaneseq
        %v698 = vshrl.u32 %v697, 7
        %v699 = vsub.s32 4, %v698
        %v700 = vrot.slane %v462, %v699
        %702 = vbcast.lane.b32.xlu0 %v700, 256
        %v703 = vpop.permute.xlu0 %702
        %s705 = sor.u32 256, 8
        %706 = vbcast.lane.b32.xlu0 %v700, %s705
        %v707 = vpop.permute.xlu0 %706
        %v708 = vlaneseq
        %v709 = vshrl.u32 %v708, 7
        %v710 = vsub.s32 5, %v709
        %v711 = vrot.slane %v462, %v710
        %713 = vbcast.lane.b32.xlu0 %v711, 256
        %v714 = vpop.permute.xlu0 %713
        %s716 = sor.u32 256, 8
        %717 = vbcast.lane.b32.xlu0 %v711, %s716
        %v718 = vpop.permute.xlu0 %717
        %v719 = vlaneseq
        %v720 = vshrl.u32 %v719, 7
        %v721 = vsub.s32 6, %v720
        %v722 = vrot.slane %v462, %v721
        %724 = vbcast.lane.b32.xlu0 %v722, 256
        %v725 = vpop.permute.xlu0 %724
        %s727 = sor.u32 256, 8
        %728 = vbcast.lane.b32.xlu0 %v722, %s727
        %v729 = vpop.permute.xlu0 %728
        %v730 = vlaneseq
        %v731 = vshrl.u32 %v730, 7
        %v732 = vsub.s32 7, %v731
        %v733 = vrot.slane %v462, %v732
        %735 = vbcast.lane.b32.xlu0 %v733, 256
        %v736 = vpop.permute.xlu0 %735
        %s738 = sor.u32 256, 8
        %739 = vbcast.lane.b32.xlu0 %v733, %s738
        %v740 = vpop.permute.xlu0 %739
        %v741 = vlaneseq
        %v742 = vshrl.u32 %v741, 7
        %v743 = vsub.s32 0, %v742
        %v744 = vrot.slane %v490, %v743
        %v745 = vlaneseq
        %v746 = vshrl.u32 %v745, 7
        %v747 = vsub.s32 0, %v746
        %v748 = vrot.slane %v504, %v747
        %v749 = vlaneseq
        %v750 = vshrl.u32 %v749, 7
        %v751 = vsub.s32 0, %v750
        %v752 = vrot.slane %v512, %v751
        %v753 = vlaneseq
        %v754 = vshrl.u32 %v753, 7
        %v755 = vsub.s32 0, %v754
        %v756 = vrot.slane %v514, %v755
        %v757 = vlaneseq
        %v758 = vshrl.u32 %v757, 7
        %v759 = vsub.s32 0, %v758
        %v760 = vrot.slane %v497, %v759
        %v761 = vlaneseq
        %v762 = vshrl.u32 %v761, 7
        %v763 = vsub.s32 0, %v762
        %v764 = vrot.slane %v511, %v763
        %v765 = vlaneseq
        %v766 = vshrl.u32 %v765, 7
        %v767 = vsub.s32 0, %v766
        %v768 = vrot.slane %v513, %v767
        %v769 = vlaneseq
        %v770 = vshrl.u32 %v769, 7
        %v771 = vsub.s32 0, %v770
        %v772 = vrot.slane %v515, %v771
        %v773 = vlaneseq
        %v774 = vshrl.u32 %v773, 7
        %v775 = vsub.s32 0, %v774
        %v776 = vrot.slane %v539, %v775
        %v777 = vlaneseq
        %v778 = vshrl.u32 %v777, 7
        %v779 = vsub.s32 0, %v778
        %v780 = vrot.slane %v553, %v779
        %v781 = vlaneseq
        %v782 = vshrl.u32 %v781, 7
        %v783 = vsub.s32 0, %v782
        %v784 = vrot.slane %v561, %v783
        %v785 = vlaneseq
        %v786 = vshrl.u32 %v785, 7
        %v787 = vsub.s32 0, %v786
        %v788 = vrot.slane %v563, %v787
        %v789 = vlaneseq
        %v790 = vshrl.u32 %v789, 7
        %v791 = vsub.s32 0, %v790
        %v792 = vrot.slane %v546, %v791
        %v793 = vlaneseq
        %v794 = vshrl.u32 %v793, 7
        %v795 = vsub.s32 0, %v794
        %v796 = vrot.slane %v560, %v795
        %v797 = vlaneseq
        %v798 = vshrl.u32 %v797, 7
        %v799 = vsub.s32 0, %v798
        %v800 = vrot.slane %v562, %v799
        %v801 = vlaneseq
        %v802 = vshrl.u32 %v801, 7
        %v803 = vsub.s32 0, %v802
        %v804 = vrot.slane %v564, %v803
        %vm821 = vcmp.gt.f32.partialorder %v744, %v571
        %vm822 = vcmp.gt.f32.partialorder %v744, %v575
        %vm823 = vcmp.gt.f32.partialorder %v748, %v582
        %vm824 = vcmp.gt.f32.partialorder %v748, %v586
        %vm825 = vcmp.gt.f32.partialorder %v752, %v593
        %vm826 = vcmp.gt.f32.partialorder %v752, %v597
        %vm827 = vcmp.gt.f32.partialorder %v756, %v604
        %vm828 = vcmp.gt.f32.partialorder %v756, %v608
        %vm829 = vcmp.gt.f32.partialorder %v760, %v615
        %vm830 = vcmp.gt.f32.partialorder %v760, %v619
        %vm831 = vcmp.gt.f32.partialorder %v764, %v626
        %vm832 = vcmp.gt.f32.partialorder %v764, %v630
        %vm833 = vcmp.gt.f32.partialorder %v768, %v637
        %vm834 = vcmp.gt.f32.partialorder %v768, %v641
        %vm835 = vcmp.gt.f32.partialorder %v772, %v648
        %vm836 = vcmp.gt.f32.partialorder %v772, %v652
        %vm837 = vcmp.gt.f32.partialorder %v776, %v659
        %vm838 = vcmp.gt.f32.partialorder %v776, %v663
        %vm839 = vcmp.gt.f32.partialorder %v780, %v670
        %vm840 = vcmp.gt.f32.partialorder %v780, %v674
        %vm841 = vcmp.gt.f32.partialorder %v784, %v681
        %vm842 = vcmp.gt.f32.partialorder %v784, %v685
        %vm843 = vcmp.gt.f32.partialorder %v788, %v692
        %vm844 = vcmp.gt.f32.partialorder %v788, %v696
        %vm845 = vcmp.gt.f32.partialorder %v792, %v703
        %vm846 = vcmp.gt.f32.partialorder %v792, %v707
        %vm847 = vcmp.gt.f32.partialorder %v796, %v714
        %vm848 = vcmp.gt.f32.partialorder %v796, %v718
        %vm849 = vcmp.gt.f32.partialorder %v800, %v725
        %vm850 = vcmp.gt.f32.partialorder %v800, %v729
        %vm851 = vcmp.gt.f32.partialorder %v804, %v736
        %vm852 = vcmp.gt.f32.partialorder %v804, %v740
        %v853 = vsel %vm821, 1, 0
        %v854 = vsel %vm822, 1, 0
        %v855 = vsel %vm823, 1, 0
        %v856 = vsel %vm824, 1, 0
        %v857 = vsel %vm825, 1, 0
        %v858 = vsel %vm826, 1, 0
        %v859 = vsel %vm827, 1, 0
        %v860 = vsel %vm828, 1, 0
        %v861 = vsel %vm829, 1, 0
        %v862 = vsel %vm830, 1, 0
        %v863 = vsel %vm831, 1, 0
        %v864 = vsel %vm832, 1, 0
        %v865 = vsel %vm833, 1, 0
        %v866 = vsel %vm834, 1, 0
        %v867 = vsel %vm835, 1, 0
        %v868 = vsel %vm836, 1, 0
        %v869 = vsel %vm837, 1, 0
        %v870 = vsel %vm838, 1, 0
        %v871 = vsel %vm839, 1, 0
        %v872 = vsel %vm840, 1, 0
        %v873 = vsel %vm841, 1, 0
        %v874 = vsel %vm842, 1, 0
        %v875 = vsel %vm843, 1, 0
        %v876 = vsel %vm844, 1, 0
        %v877 = vsel %vm845, 1, 0
        %v878 = vsel %vm846, 1, 0
        %v879 = vsel %vm847, 1, 0
        %v880 = vsel %vm848, 1, 0
        %v881 = vsel %vm849, 1, 0
        %v882 = vsel %vm850, 1, 0
        %v883 = vsel %vm851, 1, 0
        %v884 = vsel %vm852, 1, 0
        %v885 = vcvt.s32.f32 %v853
        %v886 = vcvt.s32.f32 %v854
        %v887 = vcvt.s32.f32 %v855
        %v888 = vcvt.s32.f32 %v856
        %v889 = vcvt.s32.f32 %v857
        %v890 = vcvt.s32.f32 %v858
        %v891 = vcvt.s32.f32 %v859
        %v892 = vcvt.s32.f32 %v860
        %v893 = vcvt.s32.f32 %v861
        %v894 = vcvt.s32.f32 %v862
        %v895 = vcvt.s32.f32 %v863
        %v896 = vcvt.s32.f32 %v864
        %v897 = vcvt.s32.f32 %v865
        %v898 = vcvt.s32.f32 %v866
        %v899 = vcvt.s32.f32 %v867
        %v900 = vcvt.s32.f32 %v868
        %v901 = vcvt.s32.f32 %v869
        %v902 = vcvt.s32.f32 %v870
        %v903 = vcvt.s32.f32 %v871
        %v904 = vcvt.s32.f32 %v872
        %v905 = vcvt.s32.f32 %v873
        %v906 = vcvt.s32.f32 %v874
        %v907 = vcvt.s32.f32 %v875
        %v908 = vcvt.s32.f32 %v876
        %v909 = vcvt.s32.f32 %v877
        %v910 = vcvt.s32.f32 %v878
        %v911 = vcvt.s32.f32 %v879
        %v912 = vcvt.s32.f32 %v880
        %v913 = vcvt.s32.f32 %v881
        %v914 = vcvt.s32.f32 %v882
        %v915 = vcvt.s32.f32 %v883
        %v916 = vcvt.s32.f32 %v884
        %vm917 = vcmask 130048
        %v918 = vsel %vm917, %v885, 0.0
        %919 = vadd.xlane.f32.xlu0 %v918
        %v920 = vpop.xlane.xlu0 %919
        %v921 = vsel %vm917, %v886, 0.0
        %922 = vadd.xlane.f32.xlu0 %v921
        %v923 = vpop.xlane.xlu0 %922
        %v924 = vsel %vm917, %v887, 0.0
        %925 = vadd.xlane.f32.xlu0 %v924
        %v926 = vpop.xlane.xlu0 %925
        %v927 = vsel %vm917, %v888, 0.0
        %928 = vadd.xlane.f32.xlu0 %v927
        %v929 = vpop.xlane.xlu0 %928
        %v930 = vsel %vm917, %v889, 0.0
        %931 = vadd.xlane.f32.xlu0 %v930
        %v932 = vpop.xlane.xlu0 %931
        %v933 = vsel %vm917, %v890, 0.0
        %934 = vadd.xlane.f32.xlu0 %v933
        %v935 = vpop.xlane.xlu0 %934
        %v936 = vsel %vm917, %v891, 0.0
        %937 = vadd.xlane.f32.xlu0 %v936
        %v938 = vpop.xlane.xlu0 %937
        %v939 = vsel %vm917, %v892, 0.0
        %940 = vadd.xlane.f32.xlu0 %v939
        %v941 = vpop.xlane.xlu0 %940
        %v942 = vsel %vm917, %v893, 0.0
        %943 = vadd.xlane.f32.xlu0 %v942
        %v944 = vpop.xlane.xlu0 %943
        %v945 = vsel %vm917, %v894, 0.0
        %946 = vadd.xlane.f32.xlu0 %v945
        %v947 = vpop.xlane.xlu0 %946
        %v948 = vsel %vm917, %v895, 0.0
        %949 = vadd.xlane.f32.xlu0 %v948
        %v950 = vpop.xlane.xlu0 %949
        %v951 = vsel %vm917, %v896, 0.0
        %952 = vadd.xlane.f32.xlu0 %v951
        %v953 = vpop.xlane.xlu0 %952
        %v954 = vsel %vm917, %v897, 0.0
        %955 = vadd.xlane.f32.xlu0 %v954
        %v956 = vpop.xlane.xlu0 %955
        %v957 = vsel %vm917, %v898, 0.0
        %958 = vadd.xlane.f32.xlu0 %v957
        %v959 = vpop.xlane.xlu0 %958
        %v960 = vsel %vm917, %v899, 0.0
        %961 = vadd.xlane.f32.xlu0 %v960
        %v962 = vpop.xlane.xlu0 %961
        %v963 = vsel %vm917, %v900, 0.0
        %964 = vadd.xlane.f32.xlu0 %v963
        %v965 = vpop.xlane.xlu0 %964
        %v966 = vsel %vm917, %v901, 0.0
        %967 = vadd.xlane.f32.xlu0 %v966
        %v968 = vpop.xlane.xlu0 %967
        %v969 = vsel %vm917, %v902, 0.0
        %970 = vadd.xlane.f32.xlu0 %v969
        %v971 = vpop.xlane.xlu0 %970
        %v972 = vsel %vm917, %v903, 0.0
        %973 = vadd.xlane.f32.xlu0 %v972
        %v974 = vpop.xlane.xlu0 %973
        %v975 = vsel %vm917, %v904, 0.0
        %976 = vadd.xlane.f32.xlu0 %v975
        %v977 = vpop.xlane.xlu0 %976
        %v978 = vsel %vm917, %v905, 0.0
        %979 = vadd.xlane.f32.xlu0 %v978
        %v980 = vpop.xlane.xlu0 %979
        %v981 = vsel %vm917, %v906, 0.0
        %982 = vadd.xlane.f32.xlu0 %v981
        %v983 = vpop.xlane.xlu0 %982
        %v984 = vsel %vm917, %v907, 0.0
        %985 = vadd.xlane.f32.xlu0 %v984
        %v986 = vpop.xlane.xlu0 %985
        %v987 = vsel %vm917, %v908, 0.0
        %988 = vadd.xlane.f32.xlu0 %v987
        %v989 = vpop.xlane.xlu0 %988
        %v990 = vsel %vm917, %v909, 0.0
        %991 = vadd.xlane.f32.xlu0 %v990
        %v992 = vpop.xlane.xlu0 %991
        %v993 = vsel %vm917, %v910, 0.0
        %994 = vadd.xlane.f32.xlu0 %v993
        %v995 = vpop.xlane.xlu0 %994
        %v996 = vsel %vm917, %v911, 0.0
        %997 = vadd.xlane.f32.xlu0 %v996
        %v998 = vpop.xlane.xlu0 %997
        %v999 = vsel %vm917, %v912, 0.0
        %1000 = vadd.xlane.f32.xlu0 %v999
        %v1001 = vpop.xlane.xlu0 %1000
        %v1002 = vsel %vm917, %v913, 0.0
        %1003 = vadd.xlane.f32.xlu0 %v1002
        %v1004 = vpop.xlane.xlu0 %1003
        %v1005 = vsel %vm917, %v914, 0.0
        %1006 = vadd.xlane.f32.xlu0 %v1005
        %v1007 = vpop.xlane.xlu0 %1006
        %v1008 = vsel %vm917, %v915, 0.0
        %1009 = vadd.xlane.f32.xlu0 %v1008
        %v1010 = vpop.xlane.xlu0 %1009
        %v1011 = vsel %vm917, %v916, 0.0
        %1012 = vadd.xlane.f32.xlu0 %v1011
        %v1013 = vpop.xlane.xlu0 %1012
        %vm1014 = vcmp.lt.f32.partialorder %v920, 3.0
        %vm1015 = vcmp.lt.f32.partialorder %v923, 3.0
        %vm1016 = vcmp.lt.f32.partialorder %v926, 3.0
        %vm1017 = vcmp.lt.f32.partialorder %v929, 3.0
        %vm1018 = vcmp.lt.f32.partialorder %v932, 3.0
        %vm1019 = vcmp.lt.f32.partialorder %v935, 3.0
        %vm1020 = vcmp.lt.f32.partialorder %v938, 3.0
        %vm1021 = vcmp.lt.f32.partialorder %v941, 3.0
        %vm1022 = vcmp.lt.f32.partialorder %v944, 3.0
        %vm1023 = vcmp.lt.f32.partialorder %v947, 3.0
        %vm1024 = vcmp.lt.f32.partialorder %v950, 3.0
        %vm1025 = vcmp.lt.f32.partialorder %v953, 3.0
        %vm1026 = vcmp.lt.f32.partialorder %v956, 3.0
        %vm1027 = vcmp.lt.f32.partialorder %v959, 3.0
        %vm1028 = vcmp.lt.f32.partialorder %v962, 3.0
        %vm1029 = vcmp.lt.f32.partialorder %v965, 3.0
        %vm1030 = vcmp.lt.f32.partialorder %v968, 3.0
        %vm1031 = vcmp.lt.f32.partialorder %v971, 3.0
        %vm1032 = vcmp.lt.f32.partialorder %v974, 3.0
        %vm1033 = vcmp.lt.f32.partialorder %v977, 3.0
        %vm1034 = vcmp.lt.f32.partialorder %v980, 3.0
        %vm1035 = vcmp.lt.f32.partialorder %v983, 3.0
        %vm1036 = vcmp.lt.f32.partialorder %v986, 3.0
        %vm1037 = vcmp.lt.f32.partialorder %v989, 3.0
        %vm1038 = vcmp.lt.f32.partialorder %v992, 3.0
        %vm1039 = vcmp.lt.f32.partialorder %v995, 3.0
        %vm1040 = vcmp.lt.f32.partialorder %v998, 3.0
        %vm1041 = vcmp.lt.f32.partialorder %v1001, 3.0
        %vm1042 = vcmp.lt.f32.partialorder %v1004, 3.0
        %vm1043 = vcmp.lt.f32.partialorder %v1007, 3.0
        %vm1044 = vcmp.lt.f32.partialorder %v1010, 3.0
        %vm1045 = vcmp.lt.f32.partialorder %v1013, 3.0
        %v1046 = vsel %vm1014, 1.0, 0.0
        %v1047 = vsel %vm1015, 1.0, 0.0
        %v1048 = vsel %vm1016, 1.0, 0.0
        %v1049 = vsel %vm1017, 1.0, 0.0
        %v1050 = vsel %vm1018, 1.0, 0.0
        %v1051 = vsel %vm1019, 1.0, 0.0
        %v1052 = vsel %vm1020, 1.0, 0.0
        %v1053 = vsel %vm1021, 1.0, 0.0
        %v1054 = vsel %vm1022, 1.0, 0.0
        %v1055 = vsel %vm1023, 1.0, 0.0
        %v1056 = vsel %vm1024, 1.0, 0.0
        %v1057 = vsel %vm1025, 1.0, 0.0
        %v1058 = vsel %vm1026, 1.0, 0.0
        %v1059 = vsel %vm1027, 1.0, 0.0
        %v1060 = vsel %vm1028, 1.0, 0.0
        %v1061 = vsel %vm1029, 1.0, 0.0
        %v1062 = vsel %vm1030, 1.0, 0.0
        %v1063 = vsel %vm1031, 1.0, 0.0
        %v1064 = vsel %vm1032, 1.0, 0.0
        %v1065 = vsel %vm1033, 1.0, 0.0
        %v1066 = vsel %vm1034, 1.0, 0.0
        %v1067 = vsel %vm1035, 1.0, 0.0
        %v1068 = vsel %vm1036, 1.0, 0.0
        %v1069 = vsel %vm1037, 1.0, 0.0
        %v1070 = vsel %vm1038, 1.0, 0.0
        %v1071 = vsel %vm1039, 1.0, 0.0
        %v1072 = vsel %vm1040, 1.0, 0.0
        %v1073 = vsel %vm1041, 1.0, 0.0
        %v1074 = vsel %vm1042, 1.0, 0.0
        %v1075 = vsel %vm1043, 1.0, 0.0
        %v1076 = vsel %vm1044, 1.0, 0.0
        %v1077 = vsel %vm1045, 1.0, 0.0
        %v1080 = vlaneseq
        %v1081 = vshrl.u32 %v1080, 7
        %v1082 = vsub.s32 0, %v1081
        %v1083 = vrot.slane %v319, %v1082
        %1085 = vbcast.lane.b32.xlu0 %v1083, 256
        %v1086 = vpop.permute.xlu0 %1085
        %s1088 = sor.u32 256, 8
        %1089 = vbcast.lane.b32.xlu0 %v1083, %s1088
        %v1090 = vpop.permute.xlu0 %1089
        %v1091 = vlaneseq
        %v1092 = vshrl.u32 %v1091, 7
        %v1093 = vsub.s32 1, %v1092
        %v1094 = vrot.slane %v319, %v1093
        %1096 = vbcast.lane.b32.xlu0 %v1094, 256
        %v1097 = vpop.permute.xlu0 %1096
        %s1099 = sor.u32 256, 8
        %1100 = vbcast.lane.b32.xlu0 %v1094, %s1099
        %v1101 = vpop.permute.xlu0 %1100
        %v1102 = vlaneseq
        %v1103 = vshrl.u32 %v1102, 7
        %v1104 = vsub.s32 2, %v1103
        %v1105 = vrot.slane %v319, %v1104
        %1107 = vbcast.lane.b32.xlu0 %v1105, 256
        %v1108 = vpop.permute.xlu0 %1107
        %s1110 = sor.u32 256, 8
        %1111 = vbcast.lane.b32.xlu0 %v1105, %s1110
        %v1112 = vpop.permute.xlu0 %1111
        %v1113 = vlaneseq
        %v1114 = vshrl.u32 %v1113, 7
        %v1115 = vsub.s32 3, %v1114
        %v1116 = vrot.slane %v319, %v1115
        %1118 = vbcast.lane.b32.xlu0 %v1116, 256
        %v1119 = vpop.permute.xlu0 %1118
        %s1121 = sor.u32 256, 8
        %1122 = vbcast.lane.b32.xlu0 %v1116, %s1121
        %v1123 = vpop.permute.xlu0 %1122
        %v1124 = vlaneseq
        %v1125 = vshrl.u32 %v1124, 7
        %v1126 = vsub.s32 4, %v1125
        %v1127 = vrot.slane %v319, %v1126
        %1129 = vbcast.lane.b32.xlu0 %v1127, 256
        %v1130 = vpop.permute.xlu0 %1129
        %s1132 = sor.u32 256, 8
        %1133 = vbcast.lane.b32.xlu0 %v1127, %s1132
        %v1134 = vpop.permute.xlu0 %1133
        %v1135 = vlaneseq
        %v1136 = vshrl.u32 %v1135, 7
        %v1137 = vsub.s32 5, %v1136
        %v1138 = vrot.slane %v319, %v1137
        %1140 = vbcast.lane.b32.xlu0 %v1138, 256
        %v1141 = vpop.permute.xlu0 %1140
        %s1143 = sor.u32 256, 8
        %1144 = vbcast.lane.b32.xlu0 %v1138, %s1143
        %v1145 = vpop.permute.xlu0 %1144
        %v1146 = vlaneseq
        %v1147 = vshrl.u32 %v1146, 7
        %v1148 = vsub.s32 6, %v1147
        %v1149 = vrot.slane %v319, %v1148
        %1151 = vbcast.lane.b32.xlu0 %v1149, 256
        %v1152 = vpop.permute.xlu0 %1151
        %s1154 = sor.u32 256, 8
        %1155 = vbcast.lane.b32.xlu0 %v1149, %s1154
        %v1156 = vpop.permute.xlu0 %1155
        %v1157 = vlaneseq
        %v1158 = vshrl.u32 %v1157, 7
        %v1159 = vsub.s32 7, %v1158
        %v1160 = vrot.slane %v319, %v1159
        %1162 = vbcast.lane.b32.xlu0 %v1160, 256
        %v1163 = vpop.permute.xlu0 %1162
        %s1165 = sor.u32 256, 8
        %1166 = vbcast.lane.b32.xlu0 %v1160, %s1165
        %v1167 = vpop.permute.xlu0 %1166
        %v1168 = vlaneseq
        %v1169 = vshrl.u32 %v1168, 7
        %v1170 = vsub.s32 0, %v1169
        %v1171 = vrot.slane %v320, %v1170
        %1173 = vbcast.lane.b32.xlu0 %v1171, 256
        %v1174 = vpop.permute.xlu0 %1173
        %s1176 = sor.u32 256, 8
        %1177 = vbcast.lane.b32.xlu0 %v1171, %s1176
        %v1178 = vpop.permute.xlu0 %1177
        %v1179 = vlaneseq
        %v1180 = vshrl.u32 %v1179, 7
        %v1181 = vsub.s32 1, %v1180
        %v1182 = vrot.slane %v320, %v1181
        %1184 = vbcast.lane.b32.xlu0 %v1182, 256
        %v1185 = vpop.permute.xlu0 %1184
        %s1187 = sor.u32 256, 8
        %1188 = vbcast.lane.b32.xlu0 %v1182, %s1187
        %v1189 = vpop.permute.xlu0 %1188
        %v1190 = vlaneseq
        %v1191 = vshrl.u32 %v1190, 7
        %v1192 = vsub.s32 2, %v1191
        %v1193 = vrot.slane %v320, %v1192
        %1195 = vbcast.lane.b32.xlu0 %v1193, 256
        %v1196 = vpop.permute.xlu0 %1195
        %s1198 = sor.u32 256, 8
        %1199 = vbcast.lane.b32.xlu0 %v1193, %s1198
        %v1200 = vpop.permute.xlu0 %1199
        %v1201 = vlaneseq
        %v1202 = vshrl.u32 %v1201, 7
        %v1203 = vsub.s32 3, %v1202
        %v1204 = vrot.slane %v320, %v1203
        %1206 = vbcast.lane.b32.xlu0 %v1204, 256
        %v1207 = vpop.permute.xlu0 %1206
        %s1209 = sor.u32 256, 8
        %1210 = vbcast.lane.b32.xlu0 %v1204, %s1209
        %v1211 = vpop.permute.xlu0 %1210
        %v1212 = vlaneseq
        %v1213 = vshrl.u32 %v1212, 7
        %v1214 = vsub.s32 4, %v1213
        %v1215 = vrot.slane %v320, %v1214
        %1217 = vbcast.lane.b32.xlu0 %v1215, 256
        %v1218 = vpop.permute.xlu0 %1217
        %s1220 = sor.u32 256, 8
        %1221 = vbcast.lane.b32.xlu0 %v1215, %s1220
        %v1222 = vpop.permute.xlu0 %1221
        %v1223 = vlaneseq
        %v1224 = vshrl.u32 %v1223, 7
        %v1225 = vsub.s32 5, %v1224
        %v1226 = vrot.slane %v320, %v1225
        %1228 = vbcast.lane.b32.xlu0 %v1226, 256
        %v1229 = vpop.permute.xlu0 %1228
        %s1231 = sor.u32 256, 8
        %1232 = vbcast.lane.b32.xlu0 %v1226, %s1231
        %v1233 = vpop.permute.xlu0 %1232
        %v1234 = vlaneseq
        %v1235 = vshrl.u32 %v1234, 7
        %v1236 = vsub.s32 6, %v1235
        %v1237 = vrot.slane %v320, %v1236
        %1239 = vbcast.lane.b32.xlu0 %v1237, 256
        %v1240 = vpop.permute.xlu0 %1239
        %s1242 = sor.u32 256, 8
        %1243 = vbcast.lane.b32.xlu0 %v1237, %s1242
        %v1244 = vpop.permute.xlu0 %1243
        %v1245 = vlaneseq
        %v1246 = vshrl.u32 %v1245, 7
        %v1247 = vsub.s32 7, %v1246
        %v1248 = vrot.slane %v320, %v1247
        %1250 = vbcast.lane.b32.xlu0 %v1248, 256
        %v1251 = vpop.permute.xlu0 %1250
        %s1253 = sor.u32 256, 8
        %1254 = vbcast.lane.b32.xlu0 %v1248, %s1253
        %v1255 = vpop.permute.xlu0 %1254
        %v1288 = vadd.f32 %v1046, %v1086
        %v1289 = vadd.f32 %v1047, %v1090
        %v1290 = vadd.f32 %v1048, %v1097
        %v1291 = vadd.f32 %v1049, %v1101
        %v1292 = vadd.f32 %v1050, %v1108
        %v1293 = vadd.f32 %v1051, %v1112
        %v1294 = vadd.f32 %v1052, %v1119
        %v1295 = vadd.f32 %v1053, %v1123
        %v1296 = vadd.f32 %v1054, %v1130
        %v1297 = vadd.f32 %v1055, %v1134
        %v1298 = vadd.f32 %v1056, %v1141
        %v1299 = vadd.f32 %v1057, %v1145
        %v1300 = vadd.f32 %v1058, %v1152
        %v1301 = vadd.f32 %v1059, %v1156
        %v1302 = vadd.f32 %v1060, %v1163
        %v1303 = vadd.f32 %v1061, %v1167
        %v1304 = vadd.f32 %v1062, %v1174
        %v1305 = vadd.f32 %v1063, %v1178
        %v1306 = vadd.f32 %v1064, %v1185
        %v1307 = vadd.f32 %v1065, %v1189
        %v1308 = vadd.f32 %v1066, %v1196
        %v1309 = vadd.f32 %v1067, %v1200
        %v1310 = vadd.f32 %v1068, %v1207
        %v1311 = vadd.f32 %v1069, %v1211
        %v1312 = vadd.f32 %v1070, %v1218
        %v1313 = vadd.f32 %v1071, %v1222
        %v1314 = vadd.f32 %v1072, %v1229
        %v1315 = vadd.f32 %v1073, %v1233
        %v1316 = vadd.f32 %v1074, %v1240
        %v1317 = vadd.f32 %v1075, %v1244
        %v1318 = vadd.f32 %v1076, %v1251
        %v1319 = vadd.f32 %v1077, %v1255
        %1352 = vset.pattern.permute.xlu0 0
        %1353 = vperm.xlu0 %1352, %v1288
        %v1354 = vpop.permute.xlu0 %1353
        %1355 = vset.pattern.permute.xlu0 0
        %1356 = vperm.xlu0 %1355, %v1289
        %v1357 = vpop.permute.xlu0 %1356
        %1358 = vset.pattern.permute.xlu0 0
        %1359 = vperm.xlu0 %1358, %v1290
        %v1360 = vpop.permute.xlu0 %1359
        %1361 = vset.pattern.permute.xlu0 0
        %1362 = vperm.xlu0 %1361, %v1291
        %v1363 = vpop.permute.xlu0 %1362
        %1364 = vset.pattern.permute.xlu0 0
        %1365 = vperm.xlu0 %1364, %v1292
        %v1366 = vpop.permute.xlu0 %1365
        %1367 = vset.pattern.permute.xlu0 0
        %1368 = vperm.xlu0 %1367, %v1293
        %v1369 = vpop.permute.xlu0 %1368
        %1370 = vset.pattern.permute.xlu0 0
        %1371 = vperm.xlu0 %1370, %v1294
        %v1372 = vpop.permute.xlu0 %1371
        %1373 = vset.pattern.permute.xlu0 0
        %1374 = vperm.xlu0 %1373, %v1295
        %v1375 = vpop.permute.xlu0 %1374
        %1376 = vset.pattern.permute.xlu0 0
        %1377 = vperm.xlu0 %1376, %v1296
        %v1378 = vpop.permute.xlu0 %1377
        %1379 = vset.pattern.permute.xlu0 0
        %1380 = vperm.xlu0 %1379, %v1297
        %v1381 = vpop.permute.xlu0 %1380
        %1382 = vset.pattern.permute.xlu0 0
        %1383 = vperm.xlu0 %1382, %v1298
        %v1384 = vpop.permute.xlu0 %1383
        %1385 = vset.pattern.permute.xlu0 0
        %1386 = vperm.xlu0 %1385, %v1299
        %v1387 = vpop.permute.xlu0 %1386
        %1388 = vset.pattern.permute.xlu0 0
        %1389 = vperm.xlu0 %1388, %v1300
        %v1390 = vpop.permute.xlu0 %1389
        %1391 = vset.pattern.permute.xlu0 0
        %1392 = vperm.xlu0 %1391, %v1301
        %v1393 = vpop.permute.xlu0 %1392
        %1394 = vset.pattern.permute.xlu0 0
        %1395 = vperm.xlu0 %1394, %v1302
        %v1396 = vpop.permute.xlu0 %1395
        %1397 = vset.pattern.permute.xlu0 0
        %1398 = vperm.xlu0 %1397, %v1303
        %v1399 = vpop.permute.xlu0 %1398
        %1400 = vset.pattern.permute.xlu0 0
        %1401 = vperm.xlu0 %1400, %v1304
        %v1402 = vpop.permute.xlu0 %1401
        %1403 = vset.pattern.permute.xlu0 0
        %1404 = vperm.xlu0 %1403, %v1305
        %v1405 = vpop.permute.xlu0 %1404
        %1406 = vset.pattern.permute.xlu0 0
        %1407 = vperm.xlu0 %1406, %v1306
        %v1408 = vpop.permute.xlu0 %1407
        %1409 = vset.pattern.permute.xlu0 0
        %1410 = vperm.xlu0 %1409, %v1307
        %v1411 = vpop.permute.xlu0 %1410
        %1412 = vset.pattern.permute.xlu0 0
        %1413 = vperm.xlu0 %1412, %v1308
        %v1414 = vpop.permute.xlu0 %1413
        %1415 = vset.pattern.permute.xlu0 0
        %1416 = vperm.xlu0 %1415, %v1309
        %v1417 = vpop.permute.xlu0 %1416
        %1418 = vset.pattern.permute.xlu0 0
        %1419 = vperm.xlu0 %1418, %v1310
        %v1420 = vpop.permute.xlu0 %1419
        %1421 = vset.pattern.permute.xlu0 0
        %1422 = vperm.xlu0 %1421, %v1311
        %v1423 = vpop.permute.xlu0 %1422
        %1424 = vset.pattern.permute.xlu0 0
        %1425 = vperm.xlu0 %1424, %v1312
        %v1426 = vpop.permute.xlu0 %1425
        %1427 = vset.pattern.permute.xlu0 0
        %1428 = vperm.xlu0 %1427, %v1313
        %v1429 = vpop.permute.xlu0 %1428
        %1430 = vset.pattern.permute.xlu0 0
        %1431 = vperm.xlu0 %1430, %v1314
        %v1432 = vpop.permute.xlu0 %1431
        %1433 = vset.pattern.permute.xlu0 0
        %1434 = vperm.xlu0 %1433, %v1315
        %v1435 = vpop.permute.xlu0 %1434
        %1436 = vset.pattern.permute.xlu0 0
        %1437 = vperm.xlu0 %1436, %v1316
        %v1438 = vpop.permute.xlu0 %1437
        %1439 = vset.pattern.permute.xlu0 0
        %1440 = vperm.xlu0 %1439, %v1317
        %v1441 = vpop.permute.xlu0 %1440
        %1442 = vset.pattern.permute.xlu0 0
        %1443 = vperm.xlu0 %1442, %v1318
        %v1444 = vpop.permute.xlu0 %1443
        %1445 = vset.pattern.permute.xlu0 0
        %1446 = vperm.xlu0 %1445, %v1319
        %v1447 = vpop.permute.xlu0 %1446
        %v1448 = vlaneseq
        %v1449 = vshrl.u32 %v1448, 7
        %v1450 = vsub.s32 %v316, %v1449
        %v1451 = vrot.slane %v1354, %v1450
        %v1452 = vadd.s32 %v316, 4294967288
        %v1453 = vlaneseq
        %v1454 = vshrl.u32 %v1453, 7
        %v1455 = vsub.s32 %v1452, %v1454
        %v1456 = vrot.slane %v1357, %v1455
        %vm1457 = vcmask 130112
        %v1458 = vsel %vm1457, %v1456, %v1451
        %v1459 = vlaneseq
        %v1460 = vshrl.u32 %v1459, 7
        %v1461 = vsub.s32 %v316, %v1460
        %v1462 = vrot.slane %v1360, %v1461
        %v1463 = vlaneseq
        %v1464 = vshrl.u32 %v1463, 7
        %v1465 = vsub.s32 %v1452, %v1464
        %v1466 = vrot.slane %v1363, %v1465
        %v1467 = vsel %vm1457, %v1466, %v1462
        %v1468 = vlaneseq
        %v1469 = vshrl.u32 %v1468, 7
        %v1470 = vsub.s32 %v316, %v1469
        %v1471 = vrot.slane %v1366, %v1470
        %v1472 = vlaneseq
        %v1473 = vshrl.u32 %v1472, 7
        %v1474 = vsub.s32 %v1452, %v1473
        %v1475 = vrot.slane %v1369, %v1474
        %v1476 = vsel %vm1457, %v1475, %v1471
        %v1477 = vlaneseq
        %v1478 = vshrl.u32 %v1477, 7
        %v1479 = vsub.s32 %v316, %v1478
        %v1480 = vrot.slane %v1372, %v1479
        %v1481 = vlaneseq
        %v1482 = vshrl.u32 %v1481, 7
        %v1483 = vsub.s32 %v1452, %v1482
        %v1484 = vrot.slane %v1375, %v1483
        %v1485 = vsel %vm1457, %v1484, %v1480
        %v1486 = vlaneseq
        %v1487 = vshrl.u32 %v1486, 7
        %v1488 = vsub.s32 %v316, %v1487
        %v1489 = vrot.slane %v1378, %v1488
        %v1490 = vlaneseq
        %v1491 = vshrl.u32 %v1490, 7
        %v1492 = vsub.s32 %v1452, %v1491
        %v1493 = vrot.slane %v1381, %v1492
        %v1494 = vsel %vm1457, %v1493, %v1489
        %v1495 = vlaneseq
        %v1496 = vshrl.u32 %v1495, 7
        %v1497 = vsub.s32 %v316, %v1496
        %v1498 = vrot.slane %v1384, %v1497
        %v1499 = vlaneseq
        %v1500 = vshrl.u32 %v1499, 7
        %v1501 = vsub.s32 %v1452, %v1500
        %v1502 = vrot.slane %v1387, %v1501
        %v1503 = vsel %vm1457, %v1502, %v1498
        %v1504 = vlaneseq
        %v1505 = vshrl.u32 %v1504, 7
        %v1506 = vsub.s32 %v316, %v1505
        %v1507 = vrot.slane %v1390, %v1506
        %v1508 = vlaneseq
        %v1509 = vshrl.u32 %v1508, 7
        %v1510 = vsub.s32 %v1452, %v1509
        %v1511 = vrot.slane %v1393, %v1510
        %v1512 = vsel %vm1457, %v1511, %v1507
        %v1513 = vlaneseq
        %v1514 = vshrl.u32 %v1513, 7
        %v1515 = vsub.s32 %v316, %v1514
        %v1516 = vrot.slane %v1396, %v1515
        %v1517 = vlaneseq
        %v1518 = vshrl.u32 %v1517, 7
        %v1519 = vsub.s32 %v1452, %v1518
        %v1520 = vrot.slane %v1399, %v1519
        %v1521 = vsel %vm1457, %v1520, %v1516
        %v1522 = vlaneseq
        %v1523 = vshrl.u32 %v1522, 7
        %v1524 = vsub.s32 %v316, %v1523
        %v1525 = vrot.slane %v1402, %v1524
        %v1526 = vlaneseq
        %v1527 = vshrl.u32 %v1526, 7
        %v1528 = vsub.s32 %v1452, %v1527
        %v1529 = vrot.slane %v1405, %v1528
        %v1530 = vsel %vm1457, %v1529, %v1525
        %v1531 = vlaneseq
        %v1532 = vshrl.u32 %v1531, 7
        %v1533 = vsub.s32 %v316, %v1532
        %v1534 = vrot.slane %v1408, %v1533
        %v1535 = vlaneseq
        %v1536 = vshrl.u32 %v1535, 7
        %v1537 = vsub.s32 %v1452, %v1536
        %v1538 = vrot.slane %v1411, %v1537
        %v1539 = vsel %vm1457, %v1538, %v1534
        %v1540 = vlaneseq
        %v1541 = vshrl.u32 %v1540, 7
        %v1542 = vsub.s32 %v316, %v1541
        %v1543 = vrot.slane %v1414, %v1542
        %v1544 = vlaneseq
        %v1545 = vshrl.u32 %v1544, 7
        %v1546 = vsub.s32 %v1452, %v1545
        %v1547 = vrot.slane %v1417, %v1546
        %v1548 = vsel %vm1457, %v1547, %v1543
        %v1549 = vlaneseq
        %v1550 = vshrl.u32 %v1549, 7
        %v1551 = vsub.s32 %v316, %v1550
        %v1552 = vrot.slane %v1420, %v1551
        %v1553 = vlaneseq
        %v1554 = vshrl.u32 %v1553, 7
        %v1555 = vsub.s32 %v1452, %v1554
        %v1556 = vrot.slane %v1423, %v1555
        %v1557 = vsel %vm1457, %v1556, %v1552
        %v1558 = vlaneseq
        %v1559 = vshrl.u32 %v1558, 7
        %v1560 = vsub.s32 %v316, %v1559
        %v1561 = vrot.slane %v1426, %v1560
        %v1562 = vlaneseq
        %v1563 = vshrl.u32 %v1562, 7
        %v1564 = vsub.s32 %v1452, %v1563
        %v1565 = vrot.slane %v1429, %v1564
        %v1566 = vsel %vm1457, %v1565, %v1561
        %v1567 = vlaneseq
        %v1568 = vshrl.u32 %v1567, 7
        %v1569 = vsub.s32 %v316, %v1568
        %v1570 = vrot.slane %v1432, %v1569
        %v1571 = vlaneseq
        %v1572 = vshrl.u32 %v1571, 7
        %v1573 = vsub.s32 %v1452, %v1572
        %v1574 = vrot.slane %v1435, %v1573
        %v1575 = vsel %vm1457, %v1574, %v1570
        %v1576 = vlaneseq
        %v1577 = vshrl.u32 %v1576, 7
        %v1578 = vsub.s32 %v316, %v1577
        %v1579 = vrot.slane %v1438, %v1578
        %v1580 = vlaneseq
        %v1581 = vshrl.u32 %v1580, 7
        %v1582 = vsub.s32 %v1452, %v1581
        %v1583 = vrot.slane %v1441, %v1582
        %v1584 = vsel %vm1457, %v1583, %v1579
        %v1585 = vlaneseq
        %v1586 = vshrl.u32 %v1585, 7
        %v1587 = vsub.s32 %v316, %v1586
        %v1588 = vrot.slane %v1444, %v1587
        %v1589 = vlaneseq
        %v1590 = vshrl.u32 %v1589, 7
        %v1591 = vsub.s32 %v1452, %v1590
        %v1592 = vrot.slane %v1447, %v1591
        %v1593 = vsel %vm1457, %v1592, %v1588
        %vm1594 = vcmask 1041409
        %v1595 = vsel %vm1594, %v1467, %v1458
        %vm1596 = vcmask 1042434
        %v1597 = vsel %vm1596, %v1476, %v1595
        %vm1598 = vcmask 1043459
        %v1599 = vsel %vm1598, %v1485, %v1597
        %vm1600 = vcmask 1044484
        %v1601 = vsel %vm1600, %v1494, %v1599
        %vm1602 = vcmask 1045509
        %v1603 = vsel %vm1602, %v1503, %v1601
        %vm1604 = vcmask 1046534
        %v1605 = vsel %vm1604, %v1512, %v1603
        %vm1606 = vcmask 1047559
        %v1607 = vsel %vm1606, %v1521, %v1605
        %v1608 = vsel %vm1594, %v1539, %v1530
        %v1609 = vsel %vm1596, %v1548, %v1608
        %v1610 = vsel %vm1598, %v1557, %v1609
        %v1611 = vsel %vm1600, %v1566, %v1610
        %v1612 = vsel %vm1602, %v1575, %v1611
        %v1613 = vsel %vm1604, %v1584, %v1612
        %v1614 = vsel %vm1606, %v1593, %v1613
        %v1617 = vsel %vm917, %v1607, 0.0
        %1618 = vadd.xlane.f32.xlu0 %v1617
        %v1619 = vpop.xlane.xlu0 %1618
        %v1620 = vsel %vm917, %v1614, 0.0
        %1621 = vadd.xlane.f32.xlu0 %v1620
        %v1622 = vpop.xlane.xlu0 %1621
        %v1625 = vlaneseq
        %v1626 = vshrl.u32 %v1625, 7
        %v1627 = vsub.s32 0, %v1626
        %v1628 = vrot.slane %v1619, %v1627
        %v1629 = vlaneseq
        %v1630 = vshrl.u32 %v1629, 7
        %v1631 = vsub.s32 1, %v1630
        %v1632 = vrot.slane %v1619, %v1631
        %v1633 = vlaneseq
        %v1634 = vshrl.u32 %v1633, 7
        %v1635 = vsub.s32 2, %v1634
        %v1636 = vrot.slane %v1619, %v1635
        %v1637 = vlaneseq
        %v1638 = vshrl.u32 %v1637, 7
        %v1639 = vsub.s32 3, %v1638
        %v1640 = vrot.slane %v1619, %v1639
        %v1641 = vlaneseq
        %v1642 = vshrl.u32 %v1641, 7
        %v1643 = vsub.s32 4, %v1642
        %v1644 = vrot.slane %v1619, %v1643
        %v1645 = vlaneseq
        %v1646 = vshrl.u32 %v1645, 7
        %v1647 = vsub.s32 5, %v1646
        %v1648 = vrot.slane %v1619, %v1647
        %v1649 = vlaneseq
        %v1650 = vshrl.u32 %v1649, 7
        %v1651 = vsub.s32 6, %v1650
        %v1652 = vrot.slane %v1619, %v1651
        %v1653 = vlaneseq
        %v1654 = vshrl.u32 %v1653, 7
        %v1655 = vsub.s32 7, %v1654
        %v1656 = vrot.slane %v1619, %v1655
        %v1657 = vlaneseq
        %v1658 = vshrl.u32 %v1657, 7
        %v1659 = vsub.s32 0, %v1658
        %v1660 = vrot.slane %v1622, %v1659
        %v1661 = vlaneseq
        %v1662 = vshrl.u32 %v1661, 7
        %v1663 = vsub.s32 1, %v1662
        %v1664 = vrot.slane %v1622, %v1663
        %v1665 = vlaneseq
        %v1666 = vshrl.u32 %v1665, 7
        %v1667 = vsub.s32 2, %v1666
        %v1668 = vrot.slane %v1622, %v1667
        %v1669 = vlaneseq
        %v1670 = vshrl.u32 %v1669, 7
        %v1671 = vsub.s32 3, %v1670
        %v1672 = vrot.slane %v1622, %v1671
        %v1673 = vlaneseq
        %v1674 = vshrl.u32 %v1673, 7
        %v1675 = vsub.s32 4, %v1674
        %v1676 = vrot.slane %v1622, %v1675
        %v1677 = vlaneseq
        %v1678 = vshrl.u32 %v1677, 7
        %v1679 = vsub.s32 5, %v1678
        %v1680 = vrot.slane %v1622, %v1679
        %v1681 = vlaneseq
        %v1682 = vshrl.u32 %v1681, 7
        %v1683 = vsub.s32 6, %v1682
        %v1684 = vrot.slane %v1622, %v1683
        %v1685 = vlaneseq
        %v1686 = vshrl.u32 %v1685, 7
        %v1687 = vsub.s32 7, %v1686
        %v1688 = vrot.slane %v1622, %v1687
        %v1705 = vrcp.pop %v1628
        %v1706 = vmul.f32 %v1288, %v1705
        %v1707 = vmul.f32 %v1289, %v1705
        %v1708 = vrcp.pop %v1632
        %v1709 = vmul.f32 %v1290, %v1708
        %v1710 = vmul.f32 %v1291, %v1708
        %v1711 = vrcp.pop %v1636
        %v1712 = vmul.f32 %v1292, %v1711
        %v1713 = vmul.f32 %v1293, %v1711
        %v1714 = vrcp.pop %v1640
        %v1715 = vmul.f32 %v1294, %v1714
        %v1716 = vmul.f32 %v1295, %v1714
        %v1717 = vrcp.pop %v1644
        %v1718 = vmul.f32 %v1296, %v1717
        %v1719 = vmul.f32 %v1297, %v1717
        %v1720 = vrcp.pop %v1648
        %v1721 = vmul.f32 %v1298, %v1720
        %v1722 = vmul.f32 %v1299, %v1720
        %v1723 = vrcp.pop %v1652
        %v1724 = vmul.f32 %v1300, %v1723
        %v1725 = vmul.f32 %v1301, %v1723
        %v1726 = vrcp.pop %v1656
        %v1727 = vmul.f32 %v1302, %v1726
        %v1728 = vmul.f32 %v1303, %v1726
        %v1729 = vrcp.pop %v1660
        %v1730 = vmul.f32 %v1304, %v1729
        %v1731 = vmul.f32 %v1305, %v1729
        %v1732 = vrcp.pop %v1664
        %v1733 = vmul.f32 %v1306, %v1732
        %v1734 = vmul.f32 %v1307, %v1732
        %v1735 = vrcp.pop %v1668
        %v1736 = vmul.f32 %v1308, %v1735
        %v1737 = vmul.f32 %v1309, %v1735
        %v1738 = vrcp.pop %v1672
        %v1739 = vmul.f32 %v1310, %v1738
        %v1740 = vmul.f32 %v1311, %v1738
        %v1741 = vrcp.pop %v1676
        %v1742 = vmul.f32 %v1312, %v1741
        %v1743 = vmul.f32 %v1313, %v1741
        %v1744 = vrcp.pop %v1680
        %v1745 = vmul.f32 %v1314, %v1744
        %v1746 = vmul.f32 %v1315, %v1744
        %v1747 = vrcp.pop %v1684
        %v1748 = vmul.f32 %v1316, %v1747
        %v1749 = vmul.f32 %v1317, %v1747
        %v1750 = vrcp.pop %v1688
        %v1751 = vmul.f32 %v1318, %v1750
        %v1752 = vmul.f32 %v1319, %v1750
        %v1753 = vld [vmem:[#allocation3] sm:$0xff]
        %v1754 = vld [vmem:[#allocation3 + $0x8] sm:$0xff]
        %v1755 = vld [vmem:[%s268] sm:$0xff]
        %v1756 = vld [vmem:[%s268 + $0x8] sm:$0xff]
        %v1757 = vld [vmem:[%s268 + $0x10] sm:$0xff]
        %v1758 = vld [vmem:[%s268 + $0x18] sm:$0xff]
        %v1759 = vld [vmem:[%s268 + $0x20] sm:$0xff]
        %v1760 = vld [vmem:[%s268 + $0x28] sm:$0xff]
        %v1761 = vld [vmem:[%s268 + $0x30] sm:$0xff]
        %v1762 = vld [vmem:[%s268 + $0x38] sm:$0xff]
        %v1763 = vld [vmem:[%s268 + $0x40] sm:$0xff]
        %v1764 = vld [vmem:[%s268 + $0x48] sm:$0xff]
        %v1765 = vld [vmem:[%s268 + $0x50] sm:$0xff]
        %v1766 = vld [vmem:[%s268 + $0x58] sm:$0xff]
        %v1767 = vld [vmem:[%s268 + $0x60] sm:$0xff]
        %v1768 = vld [vmem:[%s268 + $0x68] sm:$0xff]
        %v1769 = vld [vmem:[%s268 + $0x70] sm:$0xff]
        %v1770 = vld [vmem:[%s268 + $0x78] sm:$0xff]
        %1771 = vmatprep.subr.mxu0 0.0
        %1772 = vmatpush1.msra.mxu0 %v1755
        %1773 = vmatprep.subr.mxu0 0.0
        %1774 = vmatpush1.msra.mxu0 %v1756
        %1775 = vmatprep.subr.mxu0 0.0
        %1776 = vmatpush1.msra.mxu0 %v1757
        %1777 = vmatprep.subr.mxu0 0.0
        %1778 = vmatpush1.msra.mxu0 %v1758
        %1779 = vmatprep.subr.mxu0 0.0
        %1780 = vmatpush1.msra.mxu0 %v1759
        %1781 = vmatprep.subr.mxu0 0.0
        %1782 = vmatpush1.msra.mxu0 %v1760
        %1783 = vmatprep.subr.mxu0 0.0
        %1784 = vmatpush1.msra.mxu0 %v1761
        %1785 = vmatprep.subr.mxu0 0.0
        %1786 = vmatpush1.msra.mxu0 %v1762
        %1787 = vmatprep.subr.mxu0 0.0
        %1788 = vmatpush1.msra.mxu0 %v1763
        %1789 = vmatprep.subr.mxu0 0.0
        %1790 = vmatpush1.msra.mxu0 %v1764
        %1791 = vmatprep.subr.mxu0 0.0
        %1792 = vmatpush1.msra.mxu0 %v1765
        %1793 = vmatprep.subr.mxu0 0.0
        %1794 = vmatpush1.msra.mxu0 %v1766
        %1795 = vmatprep.subr.mxu0 0.0
        %1796 = vmatpush1.msra.mxu0 %v1767
        %1797 = vmatprep.subr.mxu0 0.0
        %1798 = vmatpush1.msra.mxu0 %v1768
        %1799 = vmatprep.subr.mxu0 0.0
        %1800 = vmatpush1.msra.mxu0 %v1769
        %1801 = vmatprep.subr.mxu0 0.0
        %1802 = vmatpush1.msra.mxu0 %v1770
        %1803 = vmatprep.subr.mxu0 0.0
        %1804 = vmatpush1.msra.mxu0 0.0
        %1805 = vmatprep.subr.mxu0 0.0
        %1806 = vmatpush1.msra.mxu0 0.0
        %1807 = vmatprep.subr.mxu0 0.0
        %1808 = vmatpush1.msra.mxu0 0.0
        %1809 = vmatprep.subr.mxu0 0.0
        %1810 = vmatpush1.msra.mxu0 0.0
        %1811 = vmatprep.subr.mxu0 0.0
        %1812 = vmatpush1.msra.mxu0 0.0
        %1813 = vmatprep.subr.mxu0 0.0
        %1814 = vmatpush1.msra.mxu0 0.0
        %1815 = vmatprep.subr.mxu0 0.0
        %1816 = vmatpush1.msra.mxu0 0.0
        %1817 = vmatprep.subr.mxu0 0.0
        %1818 = vmatpush1.msra.mxu0 0.0
        %1819 = vmatprep.subr.mxu0 0.0
        %1820 = vmatpush1.msra.mxu0 0.0
        %1821 = vmatprep.subr.mxu0 0.0
        %1822 = vmatpush1.msra.mxu0 0.0
        %1823 = vmatprep.subr.mxu0 0.0
        %1824 = vmatpush1.msra.mxu0 0.0
        %1825 = vmatprep.subr.mxu0 0.0
        %1826 = vmatpush1.msra.mxu0 0.0
        %1827 = vmatprep.subr.mxu0 0.0
        %1828 = vmatpush1.msra.mxu0 0.0
        %1829 = vmatprep.subr.mxu0 0.0
        %1830 = vmatpush1.msra.mxu0 0.0
        %1831 = vmatprep.subr.mxu0 0.0
        %1832 = vmatpush1.msra.mxu0 0.0
        %1833 = vmatprep.subr.mxu0 0.0
        %1834 = vmatpush1.msra.mxu0 0.0
        %1835 = vmatprep.mubr.f32.mxu0 0.0
        %1836 = vmatmul.mubr.f32.gmra.mrb[0].mxu0 %v376
        %v1837 = vpop.f32.mrb[0].mxu0
        %v1838 = vadd.f32 0.0, %v1837
        %v1839 = vpop.f32.mrb[0].mxu0
        %1840 = vmatprep.mubr.f32.mxu0 0.0
        %1841 = vmatmul.mubr.f32.gmra.mrb[0].mxu0 %v377
        %v1842 = vpop.f32.mrb[0].mxu0
        %v1843 = vadd.f32 0.0, %v1842
        %v1844 = vpop.f32.mrb[0].mxu0
        %1845 = vdwg.mxu0
        %vm1846 = vcmp.lt.s32.totalorder %v316, 64
        %v1847 = vsel %vm1846, %v1838, 0.0
        %v1848 = vsel %vm1846, %v1843, 0.0
        %vm1849 = vcmp.ge.s32.totalorder %v316, 64
        %v1850 = vsel %vm1849, %v1838, 0.0
        %v1851 = vsel %vm1849, %v1843, 0.0
        %1884 = vset.pattern.permute.xlu0 0
        %1885 = vperm.xlu0 %1884, %v1706
        %v1886 = vpop.permute.xlu0 %1885
        %1887 = vset.pattern.permute.xlu0 0
        %1888 = vperm.xlu0 %1887, %v1707
        %v1889 = vpop.permute.xlu0 %1888
        %1890 = vset.pattern.permute.xlu0 0
        %1891 = vperm.xlu0 %1890, %v1709
        %v1892 = vpop.permute.xlu0 %1891
        %1893 = vset.pattern.permute.xlu0 0
        %1894 = vperm.xlu0 %1893, %v1710
        %v1895 = vpop.permute.xlu0 %1894
        %1896 = vset.pattern.permute.xlu0 0
        %1897 = vperm.xlu0 %1896, %v1712
        %v1898 = vpop.permute.xlu0 %1897
        %1899 = vset.pattern.permute.xlu0 0
        %1900 = vperm.xlu0 %1899, %v1713
        %v1901 = vpop.permute.xlu0 %1900
        %1902 = vset.pattern.permute.xlu0 0
        %1903 = vperm.xlu0 %1902, %v1715
        %v1904 = vpop.permute.xlu0 %1903
        %1905 = vset.pattern.permute.xlu0 0
        %1906 = vperm.xlu0 %1905, %v1716
        %v1907 = vpop.permute.xlu0 %1906
        %1908 = vset.pattern.permute.xlu0 0
        %1909 = vperm.xlu0 %1908, %v1718
        %v1910 = vpop.permute.xlu0 %1909
        %1911 = vset.pattern.permute.xlu0 0
        %1912 = vperm.xlu0 %1911, %v1719
        %v1913 = vpop.permute.xlu0 %1912
        %1914 = vset.pattern.permute.xlu0 0
        %1915 = vperm.xlu0 %1914, %v1721
        %v1916 = vpop.permute.xlu0 %1915
        %1917 = vset.pattern.permute.xlu0 0
        %1918 = vperm.xlu0 %1917, %v1722
        %v1919 = vpop.permute.xlu0 %1918
        %1920 = vset.pattern.permute.xlu0 0
        %1921 = vperm.xlu0 %1920, %v1724
        %v1922 = vpop.permute.xlu0 %1921
        %1923 = vset.pattern.permute.xlu0 0
        %1924 = vperm.xlu0 %1923, %v1725
        %v1925 = vpop.permute.xlu0 %1924
        %1926 = vset.pattern.permute.xlu0 0
        %1927 = vperm.xlu0 %1926, %v1727
        %v1928 = vpop.permute.xlu0 %1927
        %1929 = vset.pattern.permute.xlu0 0
        %1930 = vperm.xlu0 %1929, %v1728
        %v1931 = vpop.permute.xlu0 %1930
        %1932 = vset.pattern.permute.xlu0 0
        %1933 = vperm.xlu0 %1932, %v1730
        %v1934 = vpop.permute.xlu0 %1933
        %1935 = vset.pattern.permute.xlu0 0
        %1936 = vperm.xlu0 %1935, %v1731
        %v1937 = vpop.permute.xlu0 %1936
        %1938 = vset.pattern.permute.xlu0 0
        %1939 = vperm.xlu0 %1938, %v1733
        %v1940 = vpop.permute.xlu0 %1939
        %1941 = vset.pattern.permute.xlu0 0
        %1942 = vperm.xlu0 %1941, %v1734
        %v1943 = vpop.permute.xlu0 %1942
        %1944 = vset.pattern.permute.xlu0 0
        %1945 = vperm.xlu0 %1944, %v1736
        %v1946 = vpop.permute.xlu0 %1945
        %1947 = vset.pattern.permute.xlu0 0
        %1948 = vperm.xlu0 %1947, %v1737
        %v1949 = vpop.permute.xlu0 %1948
        %1950 = vset.pattern.permute.xlu0 0
        %1951 = vperm.xlu0 %1950, %v1739
        %v1952 = vpop.permute.xlu0 %1951
        %1953 = vset.pattern.permute.xlu0 0
        %1954 = vperm.xlu0 %1953, %v1740
        %v1955 = vpop.permute.xlu0 %1954
        %1956 = vset.pattern.permute.xlu0 0
        %1957 = vperm.xlu0 %1956, %v1742
        %v1958 = vpop.permute.xlu0 %1957
        %1959 = vset.pattern.permute.xlu0 0
        %1960 = vperm.xlu0 %1959, %v1743
        %v1961 = vpop.permute.xlu0 %1960
        %1962 = vset.pattern.permute.xlu0 0
        %1963 = vperm.xlu0 %1962, %v1745
        %v1964 = vpop.permute.xlu0 %1963
        %1965 = vset.pattern.permute.xlu0 0
        %1966 = vperm.xlu0 %1965, %v1746
        %v1967 = vpop.permute.xlu0 %1966
        %1968 = vset.pattern.permute.xlu0 0
        %1969 = vperm.xlu0 %1968, %v1748
        %v1970 = vpop.permute.xlu0 %1969
        %1971 = vset.pattern.permute.xlu0 0
        %1972 = vperm.xlu0 %1971, %v1749
        %v1973 = vpop.permute.xlu0 %1972
        %1974 = vset.pattern.permute.xlu0 0
        %1975 = vperm.xlu0 %1974, %v1751
        %v1976 = vpop.permute.xlu0 %1975
        %1977 = vset.pattern.permute.xlu0 0
        %1978 = vperm.xlu0 %1977, %v1752
        %v1979 = vpop.permute.xlu0 %1978
        %v1980 = vlaneseq
        %v1981 = vshrl.u32 %v1980, 7
        %v1982 = vsub.s32 %v316, %v1981
        %v1983 = vrot.slane %v1886, %v1982
        %v1984 = vlaneseq
        %v1985 = vshrl.u32 %v1984, 7
        %v1986 = vsub.s32 %v1452, %v1985
        %v1987 = vrot.slane %v1889, %v1986
        %v1988 = vsel %vm1457, %v1987, %v1983
        %v1989 = vlaneseq
        %v1990 = vshrl.u32 %v1989, 7
        %v1991 = vsub.s32 %v316, %v1990
        %v1992 = vrot.slane %v1892, %v1991
        %v1993 = vlaneseq
        %v1994 = vshrl.u32 %v1993, 7
        %v1995 = vsub.s32 %v1452, %v1994
        %v1996 = vrot.slane %v1895, %v1995
        %v1997 = vsel %vm1457, %v1996, %v1992
        %v1998 = vlaneseq
        %v1999 = vshrl.u32 %v1998, 7
        %v2000 = vsub.s32 %v316, %v1999
        %v2001 = vrot.slane %v1898, %v2000
        %v2002 = vlaneseq
        %v2003 = vshrl.u32 %v2002, 7
        %v2004 = vsub.s32 %v1452, %v2003
        %v2005 = vrot.slane %v1901, %v2004
        %v2006 = vsel %vm1457, %v2005, %v2001
        %v2007 = vlaneseq
        %v2008 = vshrl.u32 %v2007, 7
        %v2009 = vsub.s32 %v316, %v2008
        %v2010 = vrot.slane %v1904, %v2009
        %v2011 = vlaneseq
        %v2012 = vshrl.u32 %v2011, 7
        %v2013 = vsub.s32 %v1452, %v2012
        %v2014 = vrot.slane %v1907, %v2013
        %v2015 = vsel %vm1457, %v2014, %v2010
        %v2016 = vlaneseq
        %v2017 = vshrl.u32 %v2016, 7
        %v2018 = vsub.s32 %v316, %v2017
        %v2019 = vrot.slane %v1910, %v2018
        %v2020 = vlaneseq
        %v2021 = vshrl.u32 %v2020, 7
        %v2022 = vsub.s32 %v1452, %v2021
        %v2023 = vrot.slane %v1913, %v2022
        %v2024 = vsel %vm1457, %v2023, %v2019
        %v2025 = vlaneseq
        %v2026 = vshrl.u32 %v2025, 7
        %v2027 = vsub.s32 %v316, %v2026
        %v2028 = vrot.slane %v1916, %v2027
        %v2029 = vlaneseq
        %v2030 = vshrl.u32 %v2029, 7
        %v2031 = vsub.s32 %v1452, %v2030
        %v2032 = vrot.slane %v1919, %v2031
        %v2033 = vsel %vm1457, %v2032, %v2028
        %v2034 = vlaneseq
        %v2035 = vshrl.u32 %v2034, 7
        %v2036 = vsub.s32 %v316, %v2035
        %v2037 = vrot.slane %v1922, %v2036
        %v2038 = vlaneseq
        %v2039 = vshrl.u32 %v2038, 7
        %v2040 = vsub.s32 %v1452, %v2039
        %v2041 = vrot.slane %v1925, %v2040
        %v2042 = vsel %vm1457, %v2041, %v2037
        %v2043 = vlaneseq
        %v2044 = vshrl.u32 %v2043, 7
        %v2045 = vsub.s32 %v316, %v2044
        %v2046 = vrot.slane %v1928, %v2045
        %v2047 = vlaneseq
        %v2048 = vshrl.u32 %v2047, 7
        %v2049 = vsub.s32 %v1452, %v2048
        %v2050 = vrot.slane %v1931, %v2049
        %v2051 = vsel %vm1457, %v2050, %v2046
        %v2052 = vlaneseq
        %v2053 = vshrl.u32 %v2052, 7
        %v2054 = vsub.s32 %v316, %v2053
        %v2055 = vrot.slane %v1934, %v2054
        %v2056 = vlaneseq
        %v2057 = vshrl.u32 %v2056, 7
        %v2058 = vsub.s32 %v1452, %v2057
        %v2059 = vrot.slane %v1937, %v2058
        %v2060 = vsel %vm1457, %v2059, %v2055
        %v2061 = vlaneseq
        %v2062 = vshrl.u32 %v2061, 7
        %v2063 = vsub.s32 %v316, %v2062
        %v2064 = vrot.slane %v1940, %v2063
        %v2065 = vlaneseq
        %v2066 = vshrl.u32 %v2065, 7
        %v2067 = vsub.s32 %v1452, %v2066
        %v2068 = vrot.slane %v1943, %v2067
        %v2069 = vsel %vm1457, %v2068, %v2064
        %v2070 = vlaneseq
        %v2071 = vshrl.u32 %v2070, 7
        %v2072 = vsub.s32 %v316, %v2071
        %v2073 = vrot.slane %v1946, %v2072
        %v2074 = vlaneseq
        %v2075 = vshrl.u32 %v2074, 7
        %v2076 = vsub.s32 %v1452, %v2075
        %v2077 = vrot.slane %v1949, %v2076
        %v2078 = vsel %vm1457, %v2077, %v2073
        %v2079 = vlaneseq
        %v2080 = vshrl.u32 %v2079, 7
        %v2081 = vsub.s32 %v316, %v2080
        %v2082 = vrot.slane %v1952, %v2081
        %v2083 = vlaneseq
        %v2084 = vshrl.u32 %v2083, 7
        %v2085 = vsub.s32 %v1452, %v2084
        %v2086 = vrot.slane %v1955, %v2085
        %v2087 = vsel %vm1457, %v2086, %v2082
        %v2088 = vlaneseq
        %v2089 = vshrl.u32 %v2088, 7
        %v2090 = vsub.s32 %v316, %v2089
        %v2091 = vrot.slane %v1958, %v2090
        %v2092 = vlaneseq
        %v2093 = vshrl.u32 %v2092, 7
        %v2094 = vsub.s32 %v1452, %v2093
        %v2095 = vrot.slane %v1961, %v2094
        %v2096 = vsel %vm1457, %v2095, %v2091
        %v2097 = vlaneseq
        %v2098 = vshrl.u32 %v2097, 7
        %v2099 = vsub.s32 %v316, %v2098
        %v2100 = vrot.slane %v1964, %v2099
        %v2101 = vlaneseq
        %v2102 = vshrl.u32 %v2101, 7
        %v2103 = vsub.s32 %v1452, %v2102
        %v2104 = vrot.slane %v1967, %v2103
        %v2105 = vsel %vm1457, %v2104, %v2100
        %v2106 = vlaneseq
        %v2107 = vshrl.u32 %v2106, 7
        %v2108 = vsub.s32 %v316, %v2107
        %v2109 = vrot.slane %v1970, %v2108
        %v2110 = vlaneseq
        %v2111 = vshrl.u32 %v2110, 7
        %v2112 = vsub.s32 %v1452, %v2111
        %v2113 = vrot.slane %v1973, %v2112
        %v2114 = vsel %vm1457, %v2113, %v2109
        %v2115 = vlaneseq
        %v2116 = vshrl.u32 %v2115, 7
        %v2117 = vsub.s32 %v316, %v2116
        %v2118 = vrot.slane %v1976, %v2117
        %v2119 = vlaneseq
        %v2120 = vshrl.u32 %v2119, 7
        %v2121 = vsub.s32 %v1452, %v2120
        %v2122 = vrot.slane %v1979, %v2121
        %v2123 = vsel %vm1457, %v2122, %v2118
        %v2124 = vsel %vm1594, %v1997, %v1988
        %v2125 = vsel %vm1596, %v2006, %v2124
        %v2126 = vsel %vm1598, %v2015, %v2125
        %v2127 = vsel %vm1600, %v2024, %v2126
        %v2128 = vsel %vm1602, %v2033, %v2127
        %v2129 = vsel %vm1604, %v2042, %v2128
        %v2130 = vsel %vm1606, %v2051, %v2129
        %v2131 = vsel %vm1594, %v2069, %v2060
        %v2132 = vsel %vm1596, %v2078, %v2131
        %v2133 = vsel %vm1598, %v2087, %v2132
        %v2134 = vsel %vm1600, %v2096, %v2133
        %v2135 = vsel %vm1602, %v2105, %v2134
        %v2136 = vsel %vm1604, %v2114, %v2135
        %v2137 = vsel %vm1606, %v2123, %v2136
        %v2138 = vsel %vm917, %v2130, 0
        %v2140 = vsel %vm917, %v2137, 0
        %2142 = vmatprep.subr.mxu0 0.0
        %2143 = vmatpush1.msra.mxu0 %v1850
        %2144 = vmatprep.subr.mxu0 0.0
        %2145 = vmatpush1.msra.mxu0 %v1851
        %2146 = vmatprep.subr.mxu0 0.0
        %2147 = vmatpush1.msra.mxu0 0.0
        %2148 = vmatprep.subr.mxu0 0.0
        %2149 = vmatpush1.msra.mxu0 0.0
        %2150 = vmatprep.subr.mxu0 0.0
        %2151 = vmatpush1.msra.mxu0 0.0
        %2152 = vmatprep.subr.mxu0 0.0
        %2153 = vmatpush1.msra.mxu0 0.0
        %2154 = vmatprep.subr.mxu0 0.0
        %2155 = vmatpush1.msra.mxu0 0.0
        %2156 = vmatprep.subr.mxu0 0.0
        %2157 = vmatpush1.msra.mxu0 0.0
        %2158 = vmatprep.subr.mxu0 0.0
        %2159 = vmatpush1.msra.mxu0 0.0
        %2160 = vmatprep.subr.mxu0 0.0
        %2161 = vmatpush1.msra.mxu0 0.0
        %2162 = vmatprep.subr.mxu0 0.0
        %2163 = vmatpush1.msra.mxu0 0.0
        %2164 = vmatprep.subr.mxu0 0.0
        %2165 = vmatpush1.msra.mxu0 0.0
        %2166 = vmatprep.subr.mxu0 0.0
        %2167 = vmatpush1.msra.mxu0 0.0
        %2168 = vmatprep.subr.mxu0 0.0
        %2169 = vmatpush1.msra.mxu0 0.0
        %2170 = vmatprep.subr.mxu0 0.0
        %2171 = vmatpush1.msra.mxu0 0.0
        %2172 = vmatprep.subr.mxu0 0.0
        %2173 = vmatpush1.msra.mxu0 0.0
        %2174 = vmatprep.subr.mxu0 0.0
        %2175 = vmatpush1.msra.mxu0 0.0
        %2176 = vmatprep.subr.mxu0 0.0
        %2177 = vmatpush1.msra.mxu0 0.0
        %2178 = vmatprep.subr.mxu0 0.0
        %2179 = vmatpush1.msra.mxu0 0.0
        %2180 = vmatprep.subr.mxu0 0.0
        %2181 = vmatpush1.msra.mxu0 0.0
        %2182 = vmatprep.subr.mxu0 0.0
        %2183 = vmatpush1.msra.mxu0 0.0
        %2184 = vmatprep.subr.mxu0 0.0
        %2185 = vmatpush1.msra.mxu0 0.0
        %2186 = vmatprep.subr.mxu0 0.0
        %2187 = vmatpush1.msra.mxu0 0.0
        %2188 = vmatprep.subr.mxu0 0.0
        %2189 = vmatpush1.msra.mxu0 0.0
        %2190 = vmatprep.subr.mxu0 0.0
        %2191 = vmatpush1.msra.mxu0 0.0
        %2192 = vmatprep.subr.mxu0 0.0
        %2193 = vmatpush1.msra.mxu0 0.0
        %2194 = vmatprep.subr.mxu0 0.0
        %2195 = vmatpush1.msra.mxu0 0.0
        %2196 = vmatprep.subr.mxu0 0.0
        %2197 = vmatpush1.msra.mxu0 0.0
        %2198 = vmatprep.subr.mxu0 0.0
        %2199 = vmatpush1.msra.mxu0 0.0
        %2200 = vmatprep.subr.mxu0 0.0
        %2201 = vmatpush1.msra.mxu0 0.0
        %2202 = vmatprep.subr.mxu0 0.0
        %2203 = vmatpush1.msra.mxu0 0.0
        %2204 = vmatprep.subr.mxu0 0.0
        %2205 = vmatpush1.msra.mxu0 0.0
        %2206 = vmatprep.mubr.f32.mxu0 0.0
        %2207 = vmatmul.mubr.f32.gmra.mrb[0].mxu0 %v2138
        %v2208 = vpop.f32.mrb[0].mxu0
        %v2209 = vadd.f32 0.0, %v2208
        %v2210 = vpop.f32.mrb[0].mxu0
        %2211 = vmatprep.mubr.f32.mxu0 0.0
        %2212 = vmatmul.mubr.f32.gmra.mrb[0].mxu0 %v2140
        %v2213 = vpop.f32.mrb[0].mxu0
        %v2214 = vadd.f32 0.0, %v2213
        %v2215 = vpop.f32.mrb[0].mxu0
        %2216 = vdwg.mxu0
        %v2218 = vsel %vm917, %v1753, 0
        %v2221 = vsel %vm917, %v1754, 0
        %2223 = vmatprep.subr.mxu0 0.0
        %2224 = vmatpush1.msra.mxu0 %v1847
        %2225 = vmatprep.subr.mxu0 0.0
        %2226 = vmatpush1.msra.mxu0 %v1848
        %2227 = vmatprep.subr.mxu0 0.0
        %2228 = vmatpush1.msra.mxu0 0.0
        %2229 = vmatprep.subr.mxu0 0.0
        %2230 = vmatpush1.msra.mxu0 0.0
        %2231 = vmatprep.subr.mxu0 0.0
        %2232 = vmatpush1.msra.mxu0 0.0
        %2233 = vmatprep.subr.mxu0 0.0
        %2234 = vmatpush1.msra.mxu0 0.0
        %2235 = vmatprep.subr.mxu0 0.0
        %2236 = vmatpush1.msra.mxu0 0.0
        %2237 = vmatprep.subr.mxu0 0.0
        %2238 = vmatpush1.msra.mxu0 0.0
        %2239 = vmatprep.subr.mxu0 0.0
        %2240 = vmatpush1.msra.mxu0 0.0
        %2241 = vmatprep.subr.mxu0 0.0
        %2242 = vmatpush1.msra.mxu0 0.0
        %2243 = vmatprep.subr.mxu0 0.0
        %2244 = vmatpush1.msra.mxu0 0.0
        %2245 = vmatprep.subr.mxu0 0.0
        %2246 = vmatpush1.msra.mxu0 0.0
        %2247 = vmatprep.subr.mxu0 0.0
        %2248 = vmatpush1.msra.mxu0 0.0
        %2249 = vmatprep.subr.mxu0 0.0
        %2250 = vmatpush1.msra.mxu0 0.0
        %2251 = vmatprep.subr.mxu0 0.0
        %2252 = vmatpush1.msra.mxu0 0.0
        %2253 = vmatprep.subr.mxu0 0.0
        %2254 = vmatpush1.msra.mxu0 0.0
        %2255 = vmatprep.subr.mxu0 0.0
        %2256 = vmatpush1.msra.mxu0 0.0
        %2257 = vmatprep.subr.mxu0 0.0
        %2258 = vmatpush1.msra.mxu0 0.0
        %2259 = vmatprep.subr.mxu0 0.0
        %2260 = vmatpush1.msra.mxu0 0.0
        %2261 = vmatprep.subr.mxu0 0.0
        %2262 = vmatpush1.msra.mxu0 0.0
        %2263 = vmatprep.subr.mxu0 0.0
        %2264 = vmatpush1.msra.mxu0 0.0
        %2265 = vmatprep.subr.mxu0 0.0
        %2266 = vmatpush1.msra.mxu0 0.0
        %2267 = vmatprep.subr.mxu0 0.0
        %2268 = vmatpush1.msra.mxu0 0.0
        %2269 = vmatprep.subr.mxu0 0.0
        %2270 = vmatpush1.msra.mxu0 0.0
        %2271 = vmatprep.subr.mxu0 0.0
        %2272 = vmatpush1.msra.mxu0 0.0
        %2273 = vmatprep.subr.mxu0 0.0
        %2274 = vmatpush1.msra.mxu0 0.0
        %2275 = vmatprep.subr.mxu0 0.0
        %2276 = vmatpush1.msra.mxu0 0.0
        %2277 = vmatprep.subr.mxu0 0.0
        %2278 = vmatpush1.msra.mxu0 0.0
        %2279 = vmatprep.subr.mxu0 0.0
        %2280 = vmatpush1.msra.mxu0 0.0
        %2281 = vmatprep.subr.mxu0 0.0
        %2282 = vmatpush1.msra.mxu0 0.0
        %2283 = vmatprep.subr.mxu0 0.0
        %2284 = vmatpush1.msra.mxu0 0.0
        %2285 = vmatprep.subr.mxu0 0.0
        %2286 = vmatpush1.msra.mxu0 0.0
        %2287 = vmatprep.mubr.f32.mxu0 0.0
        %2288 = vmatmul.mubr.f32.gmra.mrb[0].mxu0 %v2218
        %v2289 = vpop.f32.mrb[0].mxu0
        %v2290 = vadd.f32 %v2209, %v2289
        %v2291 = vpop.f32.mrb[0].mxu0
        %2292 = vmatprep.mubr.f32.mxu0 0.0
        %2293 = vmatmul.mubr.f32.gmra.mrb[0].mxu0 %v2221
        %v2294 = vpop.f32.mrb[0].mxu0
        %v2295 = vadd.f32 %v2214, %v2294
        %v2296 = vpop.f32.mrb[0].mxu0
        %2297 = vdwg.mxu0
        %v2298 = vmax.f32 %v2290, 0.0
        %v2299 = vmax.f32 %v2295, 0.0
        %v2300 = vld [vmem:[%s277] sm:$0xff]
        %v2301 = vld [vmem:[%s277 + $0x8] sm:$0xff]
        %v2302 = vld [vmem:[%s277 + $0x10] sm:$0xff]
        %v2303 = vld [vmem:[%s277 + $0x18] sm:$0xff]
        %v2304 = vld [vmem:[%s277 + $0x20] sm:$0xff]
        %v2305 = vld [vmem:[%s277 + $0x28] sm:$0xff]
        %v2306 = vld [vmem:[%s277 + $0x30] sm:$0xff]
        %v2307 = vld [vmem:[%s277 + $0x38] sm:$0xff]
        %v2308 = vld [vmem:[%s277 + $0x40] sm:$0xff]
        %v2309 = vld [vmem:[%s277 + $0x48] sm:$0xff]
        %v2310 = vld [vmem:[%s277 + $0x50] sm:$0xff]
        %v2311 = vld [vmem:[%s277 + $0x58] sm:$0xff]
        %v2312 = vld [vmem:[%s277 + $0x60] sm:$0xff]
        %v2313 = vld [vmem:[%s277 + $0x68] sm:$0xff]
        %v2314 = vld [vmem:[%s277 + $0x70] sm:$0xff]
        %v2315 = vld [vmem:[%s277 + $0x78] sm:$0xff]
        %v2316 = vld [vmem:[%s311] sm:$0x1]
        %v2318 = vlaneseq
        %v2319 = vshrl.u32 %v2318, 7
        %v2320 = vsub.s32 0, %v2319
        %v2321 = vrot.slane %v2316, %v2320
        %2323 = vmatprep.subr.mxu0 0.0
        %2324 = vmatpush1.msra.mxu0 %v2300
        %2325 = vmatprep.subr.mxu0 0.0
        %2326 = vmatpush1.msra.mxu0 %v2301
        %2327 = vmatprep.subr.mxu0 0.0
        %2328 = vmatpush1.msra.mxu0 %v2302
        %2329 = vmatprep.subr.mxu0 0.0
        %2330 = vmatpush1.msra.mxu0 %v2303
        %2331 = vmatprep.subr.mxu0 0.0
        %2332 = vmatpush1.msra.mxu0 %v2304
        %2333 = vmatprep.subr.mxu0 0.0
        %2334 = vmatpush1.msra.mxu0 %v2305
        %2335 = vmatprep.subr.mxu0 0.0
        %2336 = vmatpush1.msra.mxu0 %v2306
        %2337 = vmatprep.subr.mxu0 0.0
        %2338 = vmatpush1.msra.mxu0 %v2307
        %2339 = vmatprep.subr.mxu0 0.0
        %2340 = vmatpush1.msra.mxu0 %v2308
        %2341 = vmatprep.subr.mxu0 0.0
        %2342 = vmatpush1.msra.mxu0 %v2309
        %2343 = vmatprep.subr.mxu0 0.0
        %2344 = vmatpush1.msra.mxu0 %v2310
        %2345 = vmatprep.subr.mxu0 0.0
        %2346 = vmatpush1.msra.mxu0 %v2311
        %2347 = vmatprep.subr.mxu0 0.0
        %2348 = vmatpush1.msra.mxu0 %v2312
        %2349 = vmatprep.subr.mxu0 0.0
        %2350 = vmatpush1.msra.mxu0 %v2313
        %2351 = vmatprep.subr.mxu0 0.0
        %2352 = vmatpush1.msra.mxu0 %v2314
        %2353 = vmatprep.subr.mxu0 0.0
        %2354 = vmatpush1.msra.mxu0 %v2315
        %2355 = vmatprep.subr.mxu0 0.0
        %2356 = vmatpush1.msra.mxu0 0.0
        %2357 = vmatprep.subr.mxu0 0.0
        %2358 = vmatpush1.msra.mxu0 0.0
        %2359 = vmatprep.subr.mxu0 0.0
        %2360 = vmatpush1.msra.mxu0 0.0
        %2361 = vmatprep.subr.mxu0 0.0
        %2362 = vmatpush1.msra.mxu0 0.0
        %2363 = vmatprep.subr.mxu0 0.0
        %2364 = vmatpush1.msra.mxu0 0.0
        %2365 = vmatprep.subr.mxu0 0.0
        %2366 = vmatpush1.msra.mxu0 0.0
        %2367 = vmatprep.subr.mxu0 0.0
        %2368 = vmatpush1.msra.mxu0 0.0
        %2369 = vmatprep.subr.mxu0 0.0
        %2370 = vmatpush1.msra.mxu0 0.0
        %2371 = vmatprep.subr.mxu0 0.0
        %2372 = vmatpush1.msra.mxu0 0.0
        %2373 = vmatprep.subr.mxu0 0.0
        %2374 = vmatpush1.msra.mxu0 0.0
        %2375 = vmatprep.subr.mxu0 0.0
        %2376 = vmatpush1.msra.mxu0 0.0
        %2377 = vmatprep.subr.mxu0 0.0
        %2378 = vmatpush1.msra.mxu0 0.0
        %2379 = vmatprep.subr.mxu0 0.0
        %2380 = vmatpush1.msra.mxu0 0.0
        %2381 = vmatprep.subr.mxu0 0.0
        %2382 = vmatpush1.msra.mxu0 0.0
        %2383 = vmatprep.subr.mxu0 0.0
        %2384 = vmatpush1.msra.mxu0 0.0
        %2385 = vmatprep.subr.mxu0 0.0
        %2386 = vmatpush1.msra.mxu0 0.0
        %2387 = vmatprep.mubr.f32.mxu0 0.0
        %2388 = vmatmul.mubr.f32.gmra.mrb[0].mxu0 %v2298
        %v2389 = vpop.f32.mrb[0].mxu0
        %v2390 = vadd.f32 %v2321, %v2389
        %v2391 = vpop.f32.mrb[0].mxu0
        %2392 = vmatprep.mubr.f32.mxu0 0.0
        %2393 = vmatmul.mubr.f32.gmra.mrb[0].mxu0 %v2299
        %v2394 = vpop.f32.mrb[0].mxu0
        %v2395 = vadd.f32 %v2321, %v2394
        %v2396 = vpop.f32.mrb[0].mxu0
        %2397 = vdwg.mxu0
        %vm2398 = vcmp.gt.f32.partialorder %v2390, 0.0
        %vm2399 = vcmp.gt.f32.partialorder %v2395, 0.0
        %v2400 = vmul.f32 %v2390, 0.01
        %v2401 = vmul.f32 %v2395, 0.01
        %v2402 = vsel %vm2398, %v2390, %v2400
        %v2403 = vsel %vm2399, %v2395, %v2401
        %2404 = vst [vmem:[#allocation2] sm:$0xff] %v2402
        %2405 = vst [vmem:[#allocation2 + $0x8] sm:$0xff] %v2403
        %p2406 = scmp.eq.s32.totalorder %s24, 1
        // Predicated region
        $region57: #{i2gcn_forward.1} parent=43 // pred_check
          %p2407 = pneg %p2406
        $region58: #{i2gcn_forward.1} parent=43 // pred_check_branch
          %2409 = sbr.rel (%p2407) target = $region60
        $region59: #{i2gcn_forward.1} parent=43 // pred_region
          %v2410 = vld [vmem:[%s0] sm:$0xff]
          %v2411 = vld [vmem:[%s0 + $0x8] sm:$0xff]
          %2413 = vset.pattern.permute.xlu0 0
          %2414 = vperm.xlu0 %2413, %v2410
          %v2415 = vpop.permute.xlu0 %2414
          %2418 = vset.pattern.permute.xlu0 0
          %2419 = vperm.xlu0 %2418, %v2411
          %v2420 = vpop.permute.xlu0 %2419
          %v2422 = vmul.f32 %v376, %v2415
          %v2423 = vmul.f32 %v377, %v2420
          %v2424 = vadd.f32 %v2402, %v2422
          %v2425 = vadd.f32 %v2403, %v2423
          %2426 = vst [vmem:[#allocation9] sm:$0xff] %v2424
          %2427 = vst [vmem:[#allocation9 + $0x8] sm:$0xff] %v2425
        $region60: #{i2gcn_forward.1} parent=43 // pred_fallthru
          _
        // Predicated region
        $region61: #{i2gcn_forward.1} parent=43 // pred_check
          %p2428 = pneg %p178
        $region62: #{i2gcn_forward.1} parent=43 // pred_check_branch
          %2430 = sbr.rel (%p2428) target = $region64
        $region63: #{i2gcn_forward.1} parent=43 // pred_region
          %s2432 = ssub.s32 256, 256
          %2433 = vsyncadd [#allocation6], %s2432
          %s2434 = sshll.u32 [#allocation9], 4
          %s2435 = int_to_ptr.vmem [resolvable:$true] %s2434
          %2440 = dma.vmem_to_hbm [thread:$0]  %s2435, 256, %s6, [#allocation6], 128, 128, 8
        $region64: #{i2gcn_forward.1} parent=43 // pred_fallthru
          _
        // Predicated region
        $region65: #{i2gcn_forward.1} parent=43 // pred_check
          %p2441 = pneg %p178
        $region66: #{i2gcn_forward.1} parent=43 // pred_check_branch
          %2443 = sbr.rel (%p2441) target = $region68
        $region67: #{i2gcn_forward.1} parent=43 // pred_region
          %2444 = dma.done [#allocation6], 256
        $region68: #{i2gcn_forward.1} parent=43 // pred_fallthru
          _
      $region44: #{i2gcn_forward.1} parent=5 // pred_fallthru
        _
      %p2445 = scmp.le.s32.totalorder 2, %s19
      // Predicated region
      $region69: #{i2gcn_forward.1} parent=5 // pred_check
        %p2446 = pneg %p2445
      $region70: #{i2gcn_forward.1} parent=5 // pred_check_branch
        %2448 = sbr.rel (%p2446) target = $region72
      $region71: #{i2gcn_forward.1} parent=5 // pred_region
        %s2449 = ssub.s32 %s19, 2
      $region72: #{i2gcn_forward.1} parent=5 // pred_fallthru
        _
    $region6: #{i2gcn_forward.1} parent=1 // loop_footer
      %s23 = sadd.s32 1, %s19
    $region7: #{i2gcn_forward.1} parent=1 // loop_footer_branch
      %18 = sbr.rel target = $region3
    $region8: #{i2gcn_forward.1} parent=1 // loop_exit
      _
    %2450 = vsyncpa [#allocation5], 1
    %s2451 = scalar_lea.sflag [#allocation5], 1
    %2452 = vsyncpa %s2451, 1
    %2453 = vsyncpa [#allocation8], 1
    %s2454 = scalar_lea.sflag [#allocation8], 1
    %2455 = vsyncpa %s2454, 1
    %2456 = vsyncpa [#allocation6], 1
    %s2457 = scalar_lea.sflag [#allocation6], 1
    %2458 = vsyncpa %s2457, 1

</llo_original>
